<compile_context>
chip_gen: v7x
topology: tpu7x:2x2x1
jax: 0.10.0
libtpu: 0.0.40
codegen_flags: <defaults>
</compile_context>

<pallas_src>
import functools

import jax
import jax.numpy as jnp
from jax.experimental import pallas as pl
from jax.experimental.pallas import tpu as pltpu


# ----------------------------------------------------------------------------
# Kernel
# ----------------------------------------------------------------------------
def _mlp_kernel(dims, eps, x_ref, rowp_ref, colp_ref, w_ref, out_ref):
    """Fused ModerationHeadMLP forward for one batch tile.

    dims      = (D0, D1, ..., D_last); fc_out maps D_last -> 1.
    x_ref     : (TILE_B, D0) batch tile (any float dtype, upcast to f32).
    rowp_ref  : (2, D0)  ln0 gamma / beta rows.
    colp_ref  : (Dh_max, 3L+3) column vectors:
                [b_in, (ln_g, ln_b, b)*L, fc_out weight, fc_out bias].
    w_ref     : (L+1, Dout_max, Din_max) transposed (PyTorch-layout) weights.
    out_ref   : (1, TILE_B) lane-dense logits row.
    """
    L = len(dims) - 2
    d0, d1 = dims[0], dims[1]

    x = x_ref[...].astype(jnp.float32)                       # (TB, D0)

    # ---- ln0 (row layout, two-pass variance) --------------------------------
    mu = jnp.mean(x, axis=-1, keepdims=True)
    xc = x - mu
    var = jnp.mean(xc * xc, axis=-1, keepdims=True)
    xln = xc * jax.lax.rsqrt(var + eps)
    xln = xln * rowp_ref[0:1, :] + rowp_ref[1:2, :]          # (TB, D0)

    # ---- input_fc: switch to batch-on-lanes: (D1, TB) = W0 (D1,D0) . xln^T ---
    h = jax.lax.dot_general(
        w_ref[0, :d1, :d0], xln,
        (((1,), (1,)), ((), ())),
        preferred_element_type=jnp.float32)                  # (D1, TB)
    col = 0
    h = h + colp_ref[:d1, col:col + 1]                       # + b_in (D1, 1)
    col += 1

    # ---- hidden blocks: LayerNorm -> ReLU -> (Dropout = identity) -> Linear -
    for j in range(L):
        din, dout = dims[j + 1], dims[j + 2]
        g = colp_ref[:din, col:col + 1]
        b = colp_ref[:din, col + 1:col + 2]
        bias = colp_ref[:dout, col + 2:col + 3]
        col += 3
        mu = jnp.mean(h, axis=0, keepdims=True)              # (1, TB)
        hc = h - mu
        var = jnp.mean(hc * hc, axis=0, keepdims=True)
        h = hc * jax.lax.rsqrt(var + eps) * g + b
        h = jnp.maximum(h, 0.0)
        h = jnp.dot(w_ref[j + 1, :dout, :din], h,
                    preferred_element_type=jnp.float32) + bias   # (Dout, TB)

    # ---- fc_out (D_last -> 1) on the VPU: broadcast-mult + sublane reduce ---
    dlast = dims[-1]
    w_out = colp_ref[:dlast, col:col + 1]                    # (dlast, 1)
    b_out = colp_ref[0:1, col + 1:col + 2]                   # (1, 1)
    logits = jnp.sum(h * w_out, axis=0, keepdims=True) + b_out   # (1, TB)
    out_ref[...] = logits.astype(out_ref.dtype)


# ----------------------------------------------------------------------------
# Parameter construction (PyTorch conventions: weight (Dout, Din), bias (Dout,))
# ----------------------------------------------------------------------------
def init_params(key, input_dim, hidden_layer=3, scale_factor=0.5,
                input_scale_factor=2.0 / 3.0):
    dims = [input_dim, int(input_dim * input_scale_factor)]
    for _ in range(hidden_layer):
        dims.append(int(dims[-1] * scale_factor))

    keys = iter(jax.random.split(key, 4 * (hidden_layer + 3)))

    def nrm(shape, scale=0.05):
        return (scale * jax.random.normal(next(keys), shape)).astype(jnp.float32)

    ln_gs = [1.0 + nrm((d,), 0.1) for d in dims[:-1]]         # ln0 + L block LNs
    ln_bs = [nrm((d,), 0.1) for d in dims[:-1]]
    layer_pairs = list(zip(dims[:-1], dims[1:])) + [(dims[-1], 1)]
    weights = [nrm((dout, din), 0.08) for din, dout in layer_pairs]
    biases = [nrm((dout,), 0.05) for _, dout in layer_pairs]
    return ln_gs, ln_bs, weights, biases, dims


def pack_params(ln_gs, ln_bs, weights, biases, dims):
    """Pack parameters into 3 kernel operands (rowp, colp, wbuf)."""
    L = len(dims) - 2
    d0 = dims[0]
    dh_max = max(dims[1:])
    dout_max = max(dims[1:])
    din_max = max(dims[:-1])

    rowp = jnp.zeros((2, d0), jnp.float32)
    rowp = rowp.at[0].set(jnp.asarray(ln_gs[0], jnp.float32))
    rowp = rowp.at[1].set(jnp.asarray(ln_bs[0], jnp.float32))

    ncols = 3 * L + 3
    colp = jnp.zeros((dh_max, ncols), jnp.float32)
    colp = colp.at[:dims[1], 0].set(jnp.asarray(biases[0], jnp.float32))
    col = 1
    for j in range(L):
        din, dout = dims[j + 1], dims[j + 2]
        colp = colp.at[:din, col].set(jnp.asarray(ln_gs[j + 1], jnp.float32))
        colp = colp.at[:din, col + 1].set(jnp.asarray(ln_bs[j + 1], jnp.float32))
        colp = colp.at[:dout, col + 2].set(jnp.asarray(biases[j + 1], jnp.float32))
        col += 3
    colp = colp.at[:dims[-1], col].set(
        jnp.asarray(weights[-1], jnp.float32).reshape(-1))    # fc_out weight
    colp = colp.at[0, col + 1].set(jnp.asarray(biases[-1], jnp.float32)[0])

    wbuf = jnp.zeros((L + 1, dout_max, din_max), jnp.float32)
    for j in range(L + 1):                                    # input_fc + blocks
        w = jnp.asarray(weights[j], jnp.float32)              # (Dout, Din)
        wbuf = wbuf.at[j, :w.shape[0], :w.shape[1]].set(w)
    return rowp, colp, wbuf


# ----------------------------------------------------------------------------
# Wrapper
# ----------------------------------------------------------------------------
def moderation_head_mlp(x, packed_params, dims, tile_b=4096):
    """Runs the whole MLP as one fused Pallas kernel over a batch grid."""
    batch, d0 = x.shape
    assert d0 == dims[0]
    rowp, colp, wbuf = packed_params
    L = len(dims) - 2

    if batch <= tile_b:
        tile_b = batch                               # single full block
    else:
        tile_b = max(128, (tile_b // 128) * 128)     # lane-aligned output tiles
    grid_b = pl.cdiv(batch, tile_b)                  # ragged last tile is masked

    layer_pairs = list(zip(dims[:-1], dims[1:])) + [(dims[-1], 1)]
    mm_flops = 2 * batch * sum(a * b for a, b in layer_pairs)
    ln_flops = 7 * batch * sum(dims[:-1])
    cost = pl.CostEstimate(
        flops=mm_flops + ln_flops,
        transcendentals=batch * (L + 1),
        bytes_accessed=int(x.size * x.dtype.itemsize
                           + 4 * (rowp.size + colp.size + wbuf.size + batch)),
    )

    kernel = functools.partial(_mlp_kernel, tuple(dims), 1e-5)
    out = pl.pallas_call(
        kernel,
        out_shape=jax.ShapeDtypeStruct((1, batch), jnp.float32),
        grid_spec=pltpu.PrefetchScalarGridSpec(
            num_scalar_prefetch=0,
            grid=(grid_b,),
            in_specs=[
                # x: one batch tile per grid step (natural row-major layout,
                # no wrapper transpose / pad -> minimal HBM traffic)
                pl.BlockSpec((tile_b, d0), lambda i: (i, 0)),
                # packed parameters: VMEM-resident across grid steps
                pl.BlockSpec(rowp.shape, lambda i: (0, 0)),
                pl.BlockSpec(colp.shape, lambda i: (0, 0)),
                pl.BlockSpec(wbuf.shape, lambda i: (0, 0, 0)),
            ],
            out_specs=pl.BlockSpec((1, tile_b), lambda i: (0, i)),
        ),
        compiler_params=pltpu.CompilerParams(
            # Shards batch tiles across both TensorCores on v7x when grid_b>=2.
            dimension_semantics=("parallel",),
        ),
        cost_estimate=cost,
    )(x, rowp, colp, wbuf)

    return out[0, :].reshape(batch, 1)


# ----------------------------------------------------------------------------
# Pure-JAX reference (two-pass LayerNorm, PyTorch-layout weights)
# ----------------------------------------------------------------------------
def ref_forward(x, ln_gs, ln_bs, weights, biases, eps=1e-5):
    def ln(v, g, b):
        mu = jnp.mean(v, axis=-1, keepdims=True)
        var = jnp.mean((v - mu) ** 2, axis=-1, keepdims=True)
        return (v - mu) / jnp.sqrt(var + eps) * g + b

    h = ln(x, ln_gs[0], ln_bs[0]) @ weights[0].T + biases[0]
    for j in range(1, len(ln_gs)):
        h = ln(h, ln_gs[j], ln_bs[j])
        h = jnp.maximum(h, 0.0)
        h = h @ weights[j].T + biases[j]
    return h @ weights[-1].T + biases[-1]


if __name__ == "__main__":
    # Small, module-consistent shapes:
    #   input_dim=48, input_scale_factor=2/3, scale_factor=0.5, hidden_layer=3
    #   -> dims follow the module's int(...) arithmetic: [48, 31, 15, 7, 3] -> 1
    jax.config.update("jax_default_matmul_precision", "highest")

    batch = 8
    input_dim = 48
    hidden_layer = 3

    key = jax.random.PRNGKey(0)
    kx, kp = jax.random.split(key)

    ln_gs, ln_bs, weights, biases, dims = init_params(
        kp, input_dim, hidden_layer=hidden_layer)
    x = jax.random.normal(kx, (batch, input_dim), dtype=jnp.float32)

    packed = pack_params(ln_gs, ln_bs, weights, biases, dims)
    logits = moderation_head_mlp(x, packed, dims)
    logits = jax.block_until_ready(logits)

    ref = ref_forward(x, ln_gs, ln_bs, weights, biases)
    assert logits.shape == (batch, 1), logits.shape
    max_err = float(jnp.max(jnp.abs(logits - ref)))
    assert jnp.allclose(logits, ref, atol=2e-3, rtol=2e-3), max_err
    print("KERNEL_OK")
</pallas_src>

<mosaic_0001>
module attributes {stable_mosaic.version = 11 : i64} {
  func.func @_mlp_kernel(%arg0: i32, %arg1: memref<8x48xf32, #tpu.memory_space<vmem>>, %arg2: memref<2x48xf32, #tpu.memory_space<vmem>>, %arg3: memref<32x12xf32, #tpu.memory_space<vmem>>, %arg4: memref<4x32x48xf32, #tpu.memory_space<vmem>>, %arg5: memref<1x8xf32, #tpu.memory_space<vmem>>) attributes {dimension_semantics = [#tpu.dimension_semantics<parallel>], iteration_bounds = array<i64: 1>, scalar_prefetch = 0 : i64, scratch_operands = 0 : i64, tpu.core_type = #tpu.core_type<tc>, window_params = [{transform_indices = @transform_0, window_bounds = array<i64: 8, 48>}, {pipeline_mode = #tpu.pipeline_mode<synchronous>, transform_indices = @transform_1, window_bounds = array<i64: 2, 48>}, {pipeline_mode = #tpu.pipeline_mode<synchronous>, transform_indices = @transform_2, window_bounds = array<i64: 32, 12>}, {pipeline_mode = #tpu.pipeline_mode<synchronous>, transform_indices = @transform_3, window_bounds = array<i64: 4, 32, 48>}, {transform_indices = @transform_4, window_bounds = array<i64: 1, 8>}]} {
    %c0 = arith.constant 0 : index
    %c0_0 = arith.constant 0 : index
    %0 = vector.load %arg1[%c0, %c0_0] : memref<8x48xf32, #tpu.memory_space<vmem>>, vector<8x48xf32>
    %cst = arith.constant dense<0.000000e+00> : vector<8xf32>
    %1 = vector.multi_reduction <add>, %0, %cst [1] : vector<8x48xf32> to vector<8xf32>
    %2 = vector.shape_cast %1 : vector<8xf32> to vector<8x1xf32>
    %cst_1 = arith.constant 4.800000e+01 : f32
    %3 = vector.broadcast %cst_1 : f32 to vector<8x1xf32>
    %4 = arith.divf %2, %3 : vector<8x1xf32>
    %5 = vector.broadcast %4 : vector<8x1xf32> to vector<8x48xf32>
    %6 = arith.subf %0, %5 : vector<8x48xf32>
    %7 = arith.mulf %6, %6 : vector<8x48xf32>
    %cst_2 = arith.constant dense<0.000000e+00> : vector<8xf32>
    %8 = vector.multi_reduction <add>, %7, %cst_2 [1] : vector<8x48xf32> to vector<8xf32>
    %9 = vector.shape_cast %8 : vector<8xf32> to vector<8x1xf32>
    %cst_3 = arith.constant 4.800000e+01 : f32
    %10 = vector.broadcast %cst_3 : f32 to vector<8x1xf32>
    %11 = arith.divf %9, %10 : vector<8x1xf32>
    %cst_4 = arith.constant 9.99999974E-6 : f32
    %12 = vector.broadcast %cst_4 : f32 to vector<8x1xf32>
    %13 = arith.addf %11, %12 : vector<8x1xf32>
    %14 = math.rsqrt %13 : vector<8x1xf32>
    %15 = vector.broadcast %14 : vector<8x1xf32> to vector<8x48xf32>
    %16 = arith.mulf %6, %15 : vector<8x48xf32>
    %c0_5 = arith.constant 0 : index
    %c0_6 = arith.constant 0 : index
    %17 = vector.load %arg2[%c0_5, %c0_6] : memref<2x48xf32, #tpu.memory_space<vmem>>, vector<1x48xf32>
    %18 = vector.broadcast %17 : vector<1x48xf32> to vector<8x48xf32>
    %19 = arith.mulf %16, %18 : vector<8x48xf32>
    %c1 = arith.constant 1 : index
    %c0_7 = arith.constant 0 : index
    %20 = vector.load %arg2[%c1, %c0_7] : memref<2x48xf32, #tpu.memory_space<vmem>>, vector<1x48xf32>
    %21 = vector.broadcast %20 : vector<1x48xf32> to vector<8x48xf32>
    %22 = arith.addf %19, %21 : vector<8x48xf32>
    %c0_8 = arith.constant 0 : index
    %c0_9 = arith.constant 0 : index
    %c0_10 = arith.constant 0 : index
    %23 = vector.load %arg4[%c0_8, %c0_9, %c0_10] : memref<4x32x48xf32, #tpu.memory_space<vmem>>, vector<1x32x48xf32>
    %24 = vector.shape_cast %23 : vector<1x32x48xf32> to vector<32x48xf32>
    %cst_11 = arith.constant dense<0.000000e+00> : vector<32x8xf32>
    %25 = tpu.matmul %24, %22, %cst_11 {dimension_numbers = #tpu.dot_dimension_numbers<[1], [1], [0], [0], [0, 0, 1, 0], [], []>, precision = #tpu.contract_precision<fp32>} : vector<32x48xf32>, vector<8x48xf32>, vector<32x8xf32> -> vector<32x8xf32>
    %c0_12 = arith.constant 0 : index
    %c0_13 = arith.constant 0 : index
    %26 = vector.load %arg3[%c0_12, %c0_13] : memref<32x12xf32, #tpu.memory_space<vmem>>, vector<32x1xf32>
    %27 = vector.broadcast %26 : vector<32x1xf32> to vector<32x8xf32>
    %28 = arith.addf %25, %27 : vector<32x8xf32>
    %c0_14 = arith.constant 0 : index
    %c1_15 = arith.constant 1 : index
    %29 = vector.load %arg3[%c0_14, %c1_15] : memref<32x12xf32, #tpu.memory_space<vmem>>, vector<32x1xf32>
    %c0_16 = arith.constant 0 : index
    %c2 = arith.constant 2 : index
    %30 = vector.load %arg3[%c0_16, %c2] : memref<32x12xf32, #tpu.memory_space<vmem>>, vector<32x1xf32>
    %c0_17 = arith.constant 0 : index
    %c3 = arith.constant 3 : index
    %31 = vector.load %arg3[%c0_17, %c3] : memref<32x12xf32, #tpu.memory_space<vmem>>, vector<16x1xf32>
    %cst_18 = arith.constant dense<0.000000e+00> : vector<8xf32>
    %32 = vector.multi_reduction <add>, %28, %cst_18 [0] : vector<32x8xf32> to vector<8xf32>
    %33 = vector.shape_cast %32 : vector<8xf32> to vector<1x8xf32>
    %cst_19 = arith.constant 3.200000e+01 : f32
    %34 = vector.broadcast %cst_19 : f32 to vector<1x8xf32>
    %35 = arith.divf %33, %34 : vector<1x8xf32>
    %36 = vector.broadcast %35 : vector<1x8xf32> to vector<32x8xf32>
    %37 = arith.subf %28, %36 : vector<32x8xf32>
    %38 = arith.mulf %37, %37 : vector<32x8xf32>
    %cst_20 = arith.constant dense<0.000000e+00> : vector<8xf32>
    %39 = vector.multi_reduction <add>, %38, %cst_20 [0] : vector<32x8xf32> to vector<8xf32>
    %40 = vector.shape_cast %39 : vector<8xf32> to vector<1x8xf32>
    %cst_21 = arith.constant 3.200000e+01 : f32
    %41 = vector.broadcast %cst_21 : f32 to vector<1x8xf32>
    %42 = arith.divf %40, %41 : vector<1x8xf32>
    %cst_22 = arith.constant 9.99999974E-6 : f32
    %43 = vector.broadcast %cst_22 : f32 to vector<1x8xf32>
    %44 = arith.addf %42, %43 : vector<1x8xf32>
    %45 = math.rsqrt %44 : vector<1x8xf32>
    %46 = vector.broadcast %45 : vector<1x8xf32> to vector<32x8xf32>
    %47 = arith.mulf %37, %46 : vector<32x8xf32>
    %48 = vector.broadcast %29 : vector<32x1xf32> to vector<32x8xf32>
    %49 = arith.mulf %47, %48 : vector<32x8xf32>
    %50 = vector.broadcast %30 : vector<32x1xf32> to vector<32x8xf32>
    %51 = arith.addf %49, %50 : vector<32x8xf32>
    %cst_23 = arith.constant 0.000000e+00 : f32
    %52 = vector.broadcast %cst_23 : f32 to vector<32x8xf32>
    %53 = arith.maximumf %51, %52 : vector<32x8xf32>
    %c1_24 = arith.constant 1 : index
    %c0_25 = arith.constant 0 : index
    %c0_26 = arith.constant 0 : index
    %54 = vector.load %arg4[%c1_24, %c0_25, %c0_26] : memref<4x32x48xf32, #tpu.memory_space<vmem>>, vector<1x16x32xf32>
    %55 = vector.shape_cast %54 : vector<1x16x32xf32> to vector<16x32xf32>
    %cst_27 = arith.constant dense<0.000000e+00> : vector<16x8xf32>
    %56 = tpu.matmul %55, %53, %cst_27 {dimension_numbers = #tpu.dot_dimension_numbers<[1], [0], [0], [1], [0, 0, 1, 1], [], []>, precision = #tpu.contract_precision<fp32>} : vector<16x32xf32>, vector<32x8xf32>, vector<16x8xf32> -> vector<16x8xf32>
    %57 = vector.broadcast %31 : vector<16x1xf32> to vector<16x8xf32>
    %58 = arith.addf %56, %57 : vector<16x8xf32>
    %c0_28 = arith.constant 0 : index
    %c4 = arith.constant 4 : index
    %59 = vector.load %arg3[%c0_28, %c4] : memref<32x12xf32, #tpu.memory_space<vmem>>, vector<16x1xf32>
    %c0_29 = arith.constant 0 : index
    %c5 = arith.constant 5 : index
    %60 = vector.load %arg3[%c0_29, %c5] : memref<32x12xf32, #tpu.memory_space<vmem>>, vector<16x1xf32>
    %c0_30 = arith.constant 0 : index
    %c6 = arith.constant 6 : index
    %61 = vector.load %arg3[%c0_30, %c6] : memref<32x12xf32, #tpu.memory_space<vmem>>, vector<8x1xf32>
    %cst_31 = arith.constant dense<0.000000e+00> : vector<8xf32>
    %62 = vector.multi_reduction <add>, %58, %cst_31 [0] : vector<16x8xf32> to vector<8xf32>
    %63 = vector.shape_cast %62 : vector<8xf32> to vector<1x8xf32>
    %cst_32 = arith.constant 1.600000e+01 : f32
    %64 = vector.broadcast %cst_32 : f32 to vector<1x8xf32>
    %65 = arith.divf %63, %64 : vector<1x8xf32>
    %66 = vector.broadcast %65 : vector<1x8xf32> to vector<16x8xf32>
    %67 = arith.subf %58, %66 : vector<16x8xf32>
    %68 = arith.mulf %67, %67 : vector<16x8xf32>
    %cst_33 = arith.constant dense<0.000000e+00> : vector<8xf32>
    %69 = vector.multi_reduction <add>, %68, %cst_33 [0] : vector<16x8xf32> to vector<8xf32>
    %70 = vector.shape_cast %69 : vector<8xf32> to vector<1x8xf32>
    %cst_34 = arith.constant 1.600000e+01 : f32
    %71 = vector.broadcast %cst_34 : f32 to vector<1x8xf32>
    %72 = arith.divf %70, %71 : vector<1x8xf32>
    %cst_35 = arith.constant 9.99999974E-6 : f32
    %73 = vector.broadcast %cst_35 : f32 to vector<1x8xf32>
    %74 = arith.addf %72, %73 : vector<1x8xf32>
    %75 = math.rsqrt %74 : vector<1x8xf32>
    %76 = vector.broadcast %75 : vector<1x8xf32> to vector<16x8xf32>
    %77 = arith.mulf %67, %76 : vector<16x8xf32>
    %78 = vector.broadcast %59 : vector<16x1xf32> to vector<16x8xf32>
    %79 = arith.mulf %77, %78 : vector<16x8xf32>
    %80 = vector.broadcast %60 : vector<16x1xf32> to vector<16x8xf32>
    %81 = arith.addf %79, %80 : vector<16x8xf32>
    %cst_36 = arith.constant 0.000000e+00 : f32
    %82 = vector.broadcast %cst_36 : f32 to vector<16x8xf32>
    %83 = arith.maximumf %81, %82 : vector<16x8xf32>
    %c2_37 = arith.constant 2 : index
    %c0_38 = arith.constant 0 : index
    %c0_39 = arith.constant 0 : index
    %84 = vector.load %arg4[%c2_37, %c0_38, %c0_39] : memref<4x32x48xf32, #tpu.memory_space<vmem>>, vector<1x8x16xf32>
    %85 = vector.shape_cast %84 : vector<1x8x16xf32> to vector<8x16xf32>
    %cst_40 = arith.constant dense<0.000000e+00> : vector<8x8xf32>
    %86 = tpu.matmul %85, %83, %cst_40 {dimension_numbers = #tpu.dot_dimension_numbers<[1], [0], [0], [1], [0, 0, 1, 1], [], []>, precision = #tpu.contract_precision<fp32>} : vector<8x16xf32>, vector<16x8xf32>, vector<8x8xf32> -> vector<8x8xf32>
    %87 = vector.broadcast %61 : vector<8x1xf32> to vector<8x8xf32>
    %88 = arith.addf %86, %87 : vector<8x8xf32>
    %c0_41 = arith.constant 0 : index
    %c7 = arith.constant 7 : index
    %89 = vector.load %arg3[%c0_41, %c7] : memref<32x12xf32, #tpu.memory_space<vmem>>, vector<8x1xf32>
    %c0_42 = arith.constant 0 : index
    %c8 = arith.constant 8 : index
    %90 = vector.load %arg3[%c0_42, %c8] : memref<32x12xf32, #tpu.memory_space<vmem>>, vector<8x1xf32>
    %c0_43 = arith.constant 0 : index
    %c9 = arith.constant 9 : index
    %91 = vector.load %arg3[%c0_43, %c9] : memref<32x12xf32, #tpu.memory_space<vmem>>, vector<4x1xf32>
    %cst_44 = arith.constant dense<0.000000e+00> : vector<8xf32>
    %92 = vector.multi_reduction <add>, %88, %cst_44 [0] : vector<8x8xf32> to vector<8xf32>
    %93 = vector.shape_cast %92 : vector<8xf32> to vector<1x8xf32>
    %cst_45 = arith.constant 8.000000e+00 : f32
    %94 = vector.broadcast %cst_45 : f32 to vector<1x8xf32>
    %95 = arith.divf %93, %94 : vector<1x8xf32>
    %96 = vector.broadcast %95 : vector<1x8xf32> to vector<8x8xf32>
    %97 = arith.subf %88, %96 : vector<8x8xf32>
    %98 = arith.mulf %97, %97 : vector<8x8xf32>
    %cst_46 = arith.constant dense<0.000000e+00> : vector<8xf32>
    %99 = vector.multi_reduction <add>, %98, %cst_46 [0] : vector<8x8xf32> to vector<8xf32>
    %100 = vector.shape_cast %99 : vector<8xf32> to vector<1x8xf32>
    %cst_47 = arith.constant 8.000000e+00 : f32
    %101 = vector.broadcast %cst_47 : f32 to vector<1x8xf32>
    %102 = arith.divf %100, %101 : vector<1x8xf32>
    %cst_48 = arith.constant 9.99999974E-6 : f32
    %103 = vector.broadcast %cst_48 : f32 to vector<1x8xf32>
    %104 = arith.addf %102, %103 : vector<1x8xf32>
    %105 = math.rsqrt %104 : vector<1x8xf32>
    %106 = vector.broadcast %105 : vector<1x8xf32> to vector<8x8xf32>
    %107 = arith.mulf %97, %106 : vector<8x8xf32>
    %108 = vector.broadcast %89 : vector<8x1xf32> to vector<8x8xf32>
    %109 = arith.mulf %107, %108 : vector<8x8xf32>
    %110 = vector.broadcast %90 : vector<8x1xf32> to vector<8x8xf32>
    %111 = arith.addf %109, %110 : vector<8x8xf32>
    %cst_49 = arith.constant 0.000000e+00 : f32
    %112 = vector.broadcast %cst_49 : f32 to vector<8x8xf32>
    %113 = arith.maximumf %111, %112 : vector<8x8xf32>
    %c3_50 = arith.constant 3 : index
    %c0_51 = arith.constant 0 : index
    %c0_52 = arith.constant 0 : index
    %114 = vector.load %arg4[%c3_50, %c0_51, %c0_52] : memref<4x32x48xf32, #tpu.memory_space<vmem>>, vector<1x4x8xf32>
    %115 = vector.shape_cast %114 : vector<1x4x8xf32> to vector<4x8xf32>
    %cst_53 = arith.constant dense<0.000000e+00> : vector<4x8xf32>
    %116 = tpu.matmul %115, %113, %cst_53 {dimension_numbers = #tpu.dot_dimension_numbers<[1], [0], [0], [1], [0, 0, 1, 1], [], []>, precision = #tpu.contract_precision<fp32>} : vector<4x8xf32>, vector<8x8xf32>, vector<4x8xf32> -> vector<4x8xf32>
    %117 = vector.broadcast %91 : vector<4x1xf32> to vector<4x8xf32>
    %118 = arith.addf %116, %117 : vector<4x8xf32>
    %c0_54 = arith.constant 0 : index
    %c10 = arith.constant 10 : index
    %119 = vector.load %arg3[%c0_54, %c10] : memref<32x12xf32, #tpu.memory_space<vmem>>, vector<4x1xf32>
    %c0_55 = arith.constant 0 : index
    %c11 = arith.constant 11 : index
    %120 = vector.load %arg3[%c0_55, %c11] : memref<32x12xf32, #tpu.memory_space<vmem>>, vector<1x1xf32>
    %121 = vector.broadcast %119 : vector<4x1xf32> to vector<4x8xf32>
    %122 = arith.mulf %118, %121 : vector<4x8xf32>
    %cst_56 = arith.constant dense<0.000000e+00> : vector<8xf32>
    %123 = vector.multi_reduction <add>, %122, %cst_56 [0] : vector<4x8xf32> to vector<8xf32>
    %124 = vector.shape_cast %123 : vector<8xf32> to vector<1x8xf32>
    %125 = vector.broadcast %120 : vector<1x1xf32> to vector<1x8xf32>
    %126 = arith.addf %124, %125 : vector<1x8xf32>
    %c0_57 = arith.constant 0 : index
    %c0_58 = arith.constant 0 : index
    %127 = vector.load %arg5[%c0_57, %c0_58] : memref<1x8xf32, #tpu.memory_space<vmem>>, vector<1x8xf32>
    tpu.vector_store %arg5[%c0_57, %c0_58], %126 {strides = array<i32>} : memref<1x8xf32, #tpu.memory_space<vmem>>, vector<1x8xf32>,
    return
  }
  func.func @transform_0(%arg0: i32) -> (i32, i32) {
    %c0_i32 = arith.constant 0 : i32
    %c0_i32_0 = arith.constant 0 : i32
    return %arg0, %c0_i32 : i32, i32
  }
  func.func @transform_1(%arg0: i32) -> (i32, i32) {
    %c0_i32 = arith.constant 0 : i32
    %c0_i32_0 = arith.constant 0 : i32
    %c0_i32_1 = arith.constant 0 : i32
    return %c0_i32, %c0_i32_0 : i32, i32
  }
  func.func @transform_2(%arg0: i32) -> (i32, i32) {
    %c0_i32 = arith.constant 0 : i32
    %c0_i32_0 = arith.constant 0 : i32
    %c0_i32_1 = arith.constant 0 : i32
    return %c0_i32, %c0_i32_0 : i32, i32
  }
  func.func @transform_3(%arg0: i32) -> (i32, i32, i32) {
    %c0_i32 = arith.constant 0 : i32
    %c0_i32_0 = arith.constant 0 : i32
    %c0_i32_1 = arith.constant 0 : i32
    %c0_i32_2 = arith.constant 0 : i32
    return %c0_i32, %c0_i32_0, %c0_i32_1 : i32, i32, i32
  }
  func.func @transform_4(%arg0: i32) -> (i32, i32) {
    %c0_i32 = arith.constant 0 : i32
    %c0_i32_0 = arith.constant 0 : i32
    return %c0_i32, %arg0 : i32, i32
  }
}

</mosaic_0001>

<llo_original>
// kernel: tpu_custom_call.1
$region0: #{tpu_custom_call.1}
  #allocation0 [shape = 'u32[]', space=smem, size = 0x4, offset = 0x4, fixed_abs, tag = 'smem constant byte address 0x4 - core index']
  #allocation1 [shape = 'u32[144,128]{1,0:T(1,128)}', space=vmem, size = 0x12000, scoped, tag = 'internal scratch']
  %s0 = inlined_call_operand.vmem [shape: f32[8,48], index: 0, kind: input, shape index: {}]
  %s1 = inlined_call_operand.vmem [shape: f32[2,48], index: 1, kind: input, shape index: {}]
  %s2 = inlined_call_operand.vmem [shape: f32[32,12], index: 2, kind: input, shape index: {}]
  %s3 = inlined_call_operand.hbm [shape: f32[4,32,48], index: 3, kind: input, shape index: {}]
  %s4 = inlined_call_operand.hbm [shape: f32[1,8], index: 4, kind: output, shape index: {}]
  %s5 = sld [smem:[#allocation0]]
  $region30: #{tpu_custom_call.1} parent=0
    _
  %s7 = ssub.s32 1, %s5
  %s8 = scalar_select 0, %s7, %s5
  $region1: #{tpu_custom_call.1} parent=0
    #allocation2 [shape = 'u8[65536]{0}', space=vmem, size = 0x10000, scoped, tag = 'input window, operand 3, single buffered']
    #allocation3 [shape = 's32[1]{0}', space=sflag, size = 0x4, scoped, tag = 'scoped memory for tpu_custom_call.1']
    #allocation4 [shape = 's32[1]{0}', space=sflag, size = 0x4, scoped, tag = 'scoped memory for tpu_custom_call.1']
    #allocation5 [shape = 'u8[512]{0}', space=vmem, size = 0x400, scoped, tag = 'output window, operand 0, single buffered']
    %9 = vsyncpa [#allocation3], 0
    %10 = vsyncpa [#allocation4], 0
    // Predicated region
    $region2: #{tpu_custom_call.1} parent=1 // pred_check
      _
    $region3: #{tpu_custom_call.1} parent=1 // pred_check_branch
      %12 = sbr.rel (0) target = $region5
    $region4: #{tpu_custom_call.1} parent=1 // pred_region
      _
    $region5: #{tpu_custom_call.1} parent=1 // pred_fallthru
      _
    // Predicated region
    $region6: #{tpu_custom_call.1} parent=1 // pred_check
      _
    $region7: #{tpu_custom_call.1} parent=1 // pred_check_branch
      %14 = sbr.rel (0) target = $region9
    $region8: #{tpu_custom_call.1} parent=1 // pred_region
      _
    $region9: #{tpu_custom_call.1} parent=1 // pred_fallthru
      _
    // Predicated region
    $region10: #{tpu_custom_call.1} parent=1 // pred_check
      _
    $region11: #{tpu_custom_call.1} parent=1 // pred_check_branch
      %16 = sbr.rel (0) target = $region13
    $region12: #{tpu_custom_call.1} parent=1 // pred_region
      _
    $region13: #{tpu_custom_call.1} parent=1 // pred_fallthru
      _
    // Predicated region
    $region14: #{tpu_custom_call.1} parent=1 // pred_check
      _
    $region15: #{tpu_custom_call.1} parent=1 // pred_check_branch
      %18 = sbr.rel (0) target = $region17
    $region16: #{tpu_custom_call.1} parent=1 // pred_region
      %s20 = ssub.s32 2048, 2048
      %21 = vsyncadd [#allocation3], %s20
      %s22 = sshll.u32 [#allocation2], 4
      %s23 = int_to_ptr.vmem [resolvable:$true] %s22
      %28 = dma.hbm_to_vmem [thread:$0]  %s3, 2048, %s23, [#allocation3], 128, 128, 8
    $region17: #{tpu_custom_call.1} parent=1 // pred_fallthru
      _
    // Predicated region
    $region18: #{tpu_custom_call.1} parent=1 // pred_check
      _
    $region19: #{tpu_custom_call.1} parent=1 // pred_check_branch
      %30 = sbr.rel (0) target = $region21
    $region20: #{tpu_custom_call.1} parent=1 // pred_region
      %31 = dma.done [#allocation3], 2048
    $region21: #{tpu_custom_call.1} parent=1 // pred_fallthru
      _
    %v32 = vld [vmem:[%s0] sm:$0xff]
    %vm33 = vcmask 392192
    %v34 = vsel %vm33, %v32, 0.0
    %35 = vadd.xlane.f32.xlu0 %v34
    %v36 = vpop.xlane.xlu0 %35
    %v37 = vrcp.pop 48.0
    %v38 = vmul.f32 %v36, %v37
    %v39 = vsub.f32 %v32, %v38
    %v40 = vmul.f32 %v39, %v39
    %v41 = vsel %vm33, %v40, 0.0
    %42 = vadd.xlane.f32.xlu0 %v41
    %v43 = vpop.xlane.xlu0 %42
    %v44 = vmul.f32 %v43, %v37
    %v45 = vadd.f32 %v44, 1e-05
    %v46 = vrsqrt.pop %v45
    %v47 = vmul.f32 %v39, %v46
    %v48 = vld [vmem:[%s1] sm:$0x1]
    %v49 = vlaneseq
    %v50 = vshrl.u32 %v49, 7
    %v51 = vsub.s32 0, %v50
    %v52 = vrot.slane %v48, %v51
    %v53 = vmul.f32 %v47, %v52
    %v54 = vld [vmem:[%s1 + $0x1] sm:$0x1]
    %v55 = vlaneseq
    %v56 = vshrl.u32 %v55, 7
    %v57 = vsub.s32 0, %v56
    %v58 = vrot.slane %v54, %v57
    %v59 = vadd.f32 %v53, %v58
    %v60 = vld [vmem:[#allocation2] sm:$0xff]
    %v61 = vld [vmem:[#allocation2 + $0x8] sm:$0xff]
    %v62 = vld [vmem:[#allocation2 + $0x10] sm:$0xff]
    %v63 = vld [vmem:[#allocation2 + $0x18] sm:$0xff]
    %v64 = vld [vmem:[%s2] sm:$0xff]
    %v65 = vld [vmem:[%s2 + $0x8] sm:$0xff]
    %v66 = vld [vmem:[%s2 + $0x10] sm:$0xff]
    %v67 = vld [vmem:[%s2 + $0x18] sm:$0xff]
    %69 = vset.pattern.permute.xlu0 0
    %70 = vperm.xlu0 %69, %v64
    %v71 = vpop.permute.xlu0 %70
    %74 = vset.pattern.permute.xlu0 0
    %75 = vperm.xlu0 %74, %v65
    %v76 = vpop.permute.xlu0 %75
    %79 = vset.pattern.permute.xlu0 0
    %80 = vperm.xlu0 %79, %v66
    %v81 = vpop.permute.xlu0 %80
    %84 = vset.pattern.permute.xlu0 0
    %85 = vperm.xlu0 %84, %v67
    %v86 = vpop.permute.xlu0 %85
    %v89 = vsel %vm33, %v60, 0
    %v92 = vsel %vm33, %v61, 0
    %v95 = vsel %vm33, %v62, 0
    %v98 = vsel %vm33, %v63, 0
    %v101 = vsel %vm33, %v59, 0
    %103 = vmatprep.subr.mxu0 0.0
    %v104 = vand.u32 %v101, 4294901760
    %105 = vmatpush1.xpose.msra.mxu0 %v104
    %106 = vmatprep.subr.mxu0 0.0
    %107 = vmatpush1.xpose.msra.mxu0 0.0
    %108 = vmatprep.subr.mxu0 0.0
    %109 = vmatpush1.xpose.msra.mxu0 0.0
    %110 = vmatprep.subr.mxu0 0.0
    %111 = vmatpush1.xpose.msra.mxu0 0.0
    %112 = vmatprep.subr.mxu0 0.0
    %113 = vmatpush1.xpose.msra.mxu0 0.0
    %114 = vmatprep.subr.mxu0 0.0
    %115 = vmatpush1.xpose.msra.mxu0 0.0
    %116 = vmatprep.subr.mxu0 0.0
    %117 = vmatpush1.xpose.msra.mxu0 0.0
    %118 = vmatprep.subr.mxu0 0.0
    %119 = vmatpush1.xpose.msra.mxu0 0.0
    %120 = vmatprep.subr.mxu0 0.0
    %121 = vmatpush1.xpose.msra.mxu0 0.0
    %122 = vmatprep.subr.mxu0 0.0
    %123 = vmatpush1.xpose.msra.mxu0 0.0
    %124 = vmatprep.subr.mxu0 0.0
    %125 = vmatpush1.xpose.msra.mxu0 0.0
    %126 = vmatprep.subr.mxu0 0.0
    %127 = vmatpush1.xpose.msra.mxu0 0.0
    %128 = vmatprep.subr.mxu0 0.0
    %129 = vmatpush1.xpose.msra.mxu0 0.0
    %130 = vmatprep.subr.mxu0 0.0
    %131 = vmatpush1.xpose.msra.mxu0 0.0
    %132 = vmatprep.subr.mxu0 0.0
    %133 = vmatpush1.xpose.msra.mxu0 0.0
    %134 = vmatprep.subr.mxu0 0.0
    %135 = vmatpush1.xpose.msra.mxu0 0.0
    %136 = vmatprep.subr.mxu0 0.0
    %137 = vmatpush1.xpose.msra.mxu0 0.0
    %138 = vmatprep.subr.mxu0 0.0
    %139 = vmatpush1.xpose.msra.mxu0 0.0
    %140 = vmatprep.subr.mxu0 0.0
    %141 = vmatpush1.xpose.msra.mxu0 0.0
    %142 = vmatprep.subr.mxu0 0.0
    %143 = vmatpush1.xpose.msra.mxu0 0.0
    %144 = vmatprep.subr.mxu0 0.0
    %145 = vmatpush1.xpose.msra.mxu0 0.0
    %146 = vmatprep.subr.mxu0 0.0
    %147 = vmatpush1.xpose.msra.mxu0 0.0
    %148 = vmatprep.subr.mxu0 0.0
    %149 = vmatpush1.xpose.msra.mxu0 0.0
    %150 = vmatprep.subr.mxu0 0.0
    %151 = vmatpush1.xpose.msra.mxu0 0.0
    %152 = vmatprep.subr.mxu0 0.0
    %153 = vmatpush1.xpose.msra.mxu0 0.0
    %154 = vmatprep.subr.mxu0 0.0
    %155 = vmatpush1.xpose.msra.mxu0 0.0
    %156 = vmatprep.subr.mxu0 0.0
    %157 = vmatpush1.xpose.msra.mxu0 0.0
    %158 = vmatprep.subr.mxu0 0.0
    %159 = vmatpush1.xpose.msra.mxu0 0.0
    %160 = vmatprep.subr.mxu0 0.0
    %161 = vmatpush1.xpose.msra.mxu0 0.0
    %162 = vmatprep.subr.mxu0 0.0
    %163 = vmatpush1.xpose.msra.mxu0 0.0
    %164 = vmatprep.subr.mxu0 0.0
    %165 = vmatpush1.xpose.msra.mxu0 0.0
    %166 = vmatprep.subr.mxu0 0.0
    %167 = vmatpush1.xpose.msra.mxu0 0.0
    %168 = vmatprep.mubr.f32.mxu0 0.0
    %v169 = vand.u32 %v89, 4294901760
    %v170 = vsub.f32 %v89, %v169
    %v171 = vand.u32 %v170, 4294901760
    %v172 = vsub.f32 %v170, %v171
    %v173 = vand.u32 %v172, 4294901760
    %174 = vmatmul.mubr.f32.gmra.mrb[0].mxu0 %v173
    %v175 = vpop.f32.mrb[0].mxu0
    %v176 = vadd.f32 %v71, %v175
    %v177 = vpop.f32.mrb[0].mxu0
    %178 = vmatprep.mubr.f32.mxu0 0.0
    %v179 = vand.u32 %v92, 4294901760
    %v180 = vsub.f32 %v92, %v179
    %v181 = vand.u32 %v180, 4294901760
    %v182 = vsub.f32 %v180, %v181
    %v183 = vand.u32 %v182, 4294901760
    %184 = vmatmul.mubr.f32.gmra.mrb[0].mxu0 %v183
    %v185 = vpop.f32.mrb[0].mxu0
    %v186 = vadd.f32 %v76, %v185
    %v187 = vpop.f32.mrb[0].mxu0
    %188 = vmatprep.mubr.f32.mxu0 0.0
    %v189 = vand.u32 %v95, 4294901760
    %v190 = vsub.f32 %v95, %v189
    %v191 = vand.u32 %v190, 4294901760
    %v192 = vsub.f32 %v190, %v191
    %v193 = vand.u32 %v192, 4294901760
    %194 = vmatmul.mubr.f32.gmra.mrb[0].mxu0 %v193
    %v195 = vpop.f32.mrb[0].mxu0
    %v196 = vadd.f32 %v81, %v195
    %v197 = vpop.f32.mrb[0].mxu0
    %198 = vmatprep.mubr.f32.mxu0 0.0
    %v199 = vand.u32 %v98, 4294901760
    %v200 = vsub.f32 %v98, %v199
    %v201 = vand.u32 %v200, 4294901760
    %v202 = vsub.f32 %v200, %v201
    %v203 = vand.u32 %v202, 4294901760
    %204 = vmatmul.mubr.f32.gmra.mrb[0].mxu0 %v203
    %v205 = vpop.f32.mrb[0].mxu0
    %v206 = vadd.f32 %v86, %v205
    %v207 = vpop.f32.mrb[0].mxu0
    %208 = vdwg.mxu0
    %209 = vmatprep.subr.mxu0 0.0
    %v210 = vand.u32 %v101, 4294901760
    %v211 = vsub.f32 %v101, %v210
    %v212 = vand.u32 %v211, 4294901760
    %v213 = vsub.f32 %v211, %v212
    %v214 = vand.u32 %v213, 4294901760
    %215 = vmatpush1.xpose.msra.mxu0 %v214
    %216 = vmatprep.subr.mxu0 0.0
    %217 = vmatpush1.xpose.msra.mxu0 0.0
    %218 = vmatprep.subr.mxu0 0.0
    %219 = vmatpush1.xpose.msra.mxu0 0.0
    %220 = vmatprep.subr.mxu0 0.0
    %221 = vmatpush1.xpose.msra.mxu0 0.0
    %222 = vmatprep.subr.mxu0 0.0
    %223 = vmatpush1.xpose.msra.mxu0 0.0
    %224 = vmatprep.subr.mxu0 0.0
    %225 = vmatpush1.xpose.msra.mxu0 0.0
    %226 = vmatprep.subr.mxu0 0.0
    %227 = vmatpush1.xpose.msra.mxu0 0.0
    %228 = vmatprep.subr.mxu0 0.0
    %229 = vmatpush1.xpose.msra.mxu0 0.0
    %230 = vmatprep.subr.mxu0 0.0
    %231 = vmatpush1.xpose.msra.mxu0 0.0
    %232 = vmatprep.subr.mxu0 0.0
    %233 = vmatpush1.xpose.msra.mxu0 0.0
    %234 = vmatprep.subr.mxu0 0.0
    %235 = vmatpush1.xpose.msra.mxu0 0.0
    %236 = vmatprep.subr.mxu0 0.0
    %237 = vmatpush1.xpose.msra.mxu0 0.0
    %238 = vmatprep.subr.mxu0 0.0
    %239 = vmatpush1.xpose.msra.mxu0 0.0
    %240 = vmatprep.subr.mxu0 0.0
    %241 = vmatpush1.xpose.msra.mxu0 0.0
    %242 = vmatprep.subr.mxu0 0.0
    %243 = vmatpush1.xpose.msra.mxu0 0.0
    %244 = vmatprep.subr.mxu0 0.0
    %245 = vmatpush1.xpose.msra.mxu0 0.0
    %246 = vmatprep.subr.mxu0 0.0
    %247 = vmatpush1.xpose.msra.mxu0 0.0
    %248 = vmatprep.subr.mxu0 0.0
    %249 = vmatpush1.xpose.msra.mxu0 0.0
    %250 = vmatprep.subr.mxu0 0.0
    %251 = vmatpush1.xpose.msra.mxu0 0.0
    %252 = vmatprep.subr.mxu0 0.0
    %253 = vmatpush1.xpose.msra.mxu0 0.0
    %254 = vmatprep.subr.mxu0 0.0
    %255 = vmatpush1.xpose.msra.mxu0 0.0
    %256 = vmatprep.subr.mxu0 0.0
    %257 = vmatpush1.xpose.msra.mxu0 0.0
    %258 = vmatprep.subr.mxu0 0.0
    %259 = vmatpush1.xpose.msra.mxu0 0.0
    %260 = vmatprep.subr.mxu0 0.0
    %261 = vmatpush1.xpose.msra.mxu0 0.0
    %262 = vmatprep.subr.mxu0 0.0
    %263 = vmatpush1.xpose.msra.mxu0 0.0
    %264 = vmatprep.subr.mxu0 0.0
    %265 = vmatpush1.xpose.msra.mxu0 0.0
    %266 = vmatprep.subr.mxu0 0.0
    %267 = vmatpush1.xpose.msra.mxu0 0.0
    %268 = vmatprep.subr.mxu0 0.0
    %269 = vmatpush1.xpose.msra.mxu0 0.0
    %270 = vmatprep.subr.mxu0 0.0
    %271 = vmatpush1.xpose.msra.mxu0 0.0
    %272 = vmatprep.subr.mxu0 0.0
    %273 = vmatpush1.xpose.msra.mxu0 0.0
    %274 = vmatprep.subr.mxu0 0.0
    %275 = vmatpush1.xpose.msra.mxu0 0.0
    %276 = vmatprep.subr.mxu0 0.0
    %277 = vmatpush1.xpose.msra.mxu0 0.0
    %278 = vmatprep.mubr.f32.mxu0 0.0
    %v279 = vand.u32 %v89, 4294901760
    %280 = vmatmul.mubr.f32.gmra.mrb[0].mxu0 %v279
    %v281 = vpop.f32.mrb[0].mxu0
    %v282 = vadd.f32 %v176, %v281
    %v283 = vpop.f32.mrb[0].mxu0
    %284 = vmatprep.mubr.f32.mxu0 0.0
    %v285 = vand.u32 %v92, 4294901760
    %286 = vmatmul.mubr.f32.gmra.mrb[0].mxu0 %v285
    %v287 = vpop.f32.mrb[0].mxu0
    %v288 = vadd.f32 %v186, %v287
    %v289 = vpop.f32.mrb[0].mxu0
    %290 = vmatprep.mubr.f32.mxu0 0.0
    %v291 = vand.u32 %v95, 4294901760
    %292 = vmatmul.mubr.f32.gmra.mrb[0].mxu0 %v291
    %v293 = vpop.f32.mrb[0].mxu0
    %v294 = vadd.f32 %v196, %v293
    %v295 = vpop.f32.mrb[0].mxu0
    %296 = vmatprep.mubr.f32.mxu0 0.0
    %v297 = vand.u32 %v98, 4294901760
    %298 = vmatmul.mubr.f32.gmra.mrb[0].mxu0 %v297
    %v299 = vpop.f32.mrb[0].mxu0
    %v300 = vadd.f32 %v206, %v299
    %v301 = vpop.f32.mrb[0].mxu0
    %302 = vdwg.mxu0
    %303 = vmatprep.subr.mxu0 0.0
    %v304 = vand.u32 %v101, 4294901760
    %v305 = vsub.f32 %v101, %v304
    %306 = vmatpush1.xpose.msra.mxu0 %v305
    %307 = vmatprep.subr.mxu0 0.0
    %308 = vmatpush1.xpose.msra.mxu0 0.0
    %309 = vmatprep.subr.mxu0 0.0
    %310 = vmatpush1.xpose.msra.mxu0 0.0
    %311 = vmatprep.subr.mxu0 0.0
    %312 = vmatpush1.xpose.msra.mxu0 0.0
    %313 = vmatprep.subr.mxu0 0.0
    %314 = vmatpush1.xpose.msra.mxu0 0.0
    %315 = vmatprep.subr.mxu0 0.0
    %316 = vmatpush1.xpose.msra.mxu0 0.0
    %317 = vmatprep.subr.mxu0 0.0
    %318 = vmatpush1.xpose.msra.mxu0 0.0
    %319 = vmatprep.subr.mxu0 0.0
    %320 = vmatpush1.xpose.msra.mxu0 0.0
    %321 = vmatprep.subr.mxu0 0.0
    %322 = vmatpush1.xpose.msra.mxu0 0.0
    %323 = vmatprep.subr.mxu0 0.0
    %324 = vmatpush1.xpose.msra.mxu0 0.0
    %325 = vmatprep.subr.mxu0 0.0
    %326 = vmatpush1.xpose.msra.mxu0 0.0
    %327 = vmatprep.subr.mxu0 0.0
    %328 = vmatpush1.xpose.msra.mxu0 0.0
    %329 = vmatprep.subr.mxu0 0.0
    %330 = vmatpush1.xpose.msra.mxu0 0.0
    %331 = vmatprep.subr.mxu0 0.0
    %332 = vmatpush1.xpose.msra.mxu0 0.0
    %333 = vmatprep.subr.mxu0 0.0
    %334 = vmatpush1.xpose.msra.mxu0 0.0
    %335 = vmatprep.subr.mxu0 0.0
    %336 = vmatpush1.xpose.msra.mxu0 0.0
    %337 = vmatprep.subr.mxu0 0.0
    %338 = vmatpush1.xpose.msra.mxu0 0.0
    %339 = vmatprep.subr.mxu0 0.0
    %340 = vmatpush1.xpose.msra.mxu0 0.0
    %341 = vmatprep.subr.mxu0 0.0
    %342 = vmatpush1.xpose.msra.mxu0 0.0
    %343 = vmatprep.subr.mxu0 0.0
    %344 = vmatpush1.xpose.msra.mxu0 0.0
    %345 = vmatprep.subr.mxu0 0.0
    %346 = vmatpush1.xpose.msra.mxu0 0.0
    %347 = vmatprep.subr.mxu0 0.0
    %348 = vmatpush1.xpose.msra.mxu0 0.0
    %349 = vmatprep.subr.mxu0 0.0
    %350 = vmatpush1.xpose.msra.mxu0 0.0
    %351 = vmatprep.subr.mxu0 0.0
    %352 = vmatpush1.xpose.msra.mxu0 0.0
    %353 = vmatprep.subr.mxu0 0.0
    %354 = vmatpush1.xpose.msra.mxu0 0.0
    %355 = vmatprep.subr.mxu0 0.0
    %356 = vmatpush1.xpose.msra.mxu0 0.0
    %357 = vmatprep.subr.mxu0 0.0
    %358 = vmatpush1.xpose.msra.mxu0 0.0
    %359 = vmatprep.subr.mxu0 0.0
    %360 = vmatpush1.xpose.msra.mxu0 0.0
    %361 = vmatprep.subr.mxu0 0.0
    %362 = vmatpush1.xpose.msra.mxu0 0.0
    %363 = vmatprep.subr.mxu0 0.0
    %364 = vmatpush1.xpose.msra.mxu0 0.0
    %365 = vmatprep.subr.mxu0 0.0
    %366 = vmatpush1.xpose.msra.mxu0 0.0
    %367 = vmatprep.subr.mxu0 0.0
    %368 = vmatpush1.xpose.msra.mxu0 0.0
    %369 = vmatprep.mubr.f32.mxu0 0.0
    %v370 = vand.u32 %v89, 4294901760
    %v371 = vsub.f32 %v89, %v370
    %372 = vmatmul.mubr.f32.gmra.mrb[0].mxu0 %v371
    %v373 = vpop.f32.mrb[0].mxu0
    %v374 = vadd.f32 %v282, %v373
    %v375 = vpop.f32.mrb[0].mxu0
    %376 = vmatprep.mubr.f32.mxu0 0.0
    %v377 = vand.u32 %v92, 4294901760
    %v378 = vsub.f32 %v92, %v377
    %379 = vmatmul.mubr.f32.gmra.mrb[0].mxu0 %v378
    %v380 = vpop.f32.mrb[0].mxu0
    %v381 = vadd.f32 %v288, %v380
    %v382 = vpop.f32.mrb[0].mxu0
    %383 = vmatprep.mubr.f32.mxu0 0.0
    %v384 = vand.u32 %v95, 4294901760
    %v385 = vsub.f32 %v95, %v384
    %386 = vmatmul.mubr.f32.gmra.mrb[0].mxu0 %v385
    %v387 = vpop.f32.mrb[0].mxu0
    %v388 = vadd.f32 %v294, %v387
    %v389 = vpop.f32.mrb[0].mxu0
    %390 = vmatprep.mubr.f32.mxu0 0.0
    %v391 = vand.u32 %v98, 4294901760
    %v392 = vsub.f32 %v98, %v391
    %393 = vmatmul.mubr.f32.gmra.mrb[0].mxu0 %v392
    %v394 = vpop.f32.mrb[0].mxu0
    %v395 = vadd.f32 %v300, %v394
    %v396 = vpop.f32.mrb[0].mxu0
    %397 = vdwg.mxu0
    %398 = vmatprep.subr.mxu0 0.0
    %v399 = vand.u32 %v101, 4294901760
    %400 = vmatpush1.xpose.msra.mxu0 %v399
    %401 = vmatprep.subr.mxu0 0.0
    %402 = vmatpush1.xpose.msra.mxu0 0.0
    %403 = vmatprep.subr.mxu0 0.0
    %404 = vmatpush1.xpose.msra.mxu0 0.0
    %405 = vmatprep.subr.mxu0 0.0
    %406 = vmatpush1.xpose.msra.mxu0 0.0
    %407 = vmatprep.subr.mxu0 0.0
    %408 = vmatpush1.xpose.msra.mxu0 0.0
    %409 = vmatprep.subr.mxu0 0.0
    %410 = vmatpush1.xpose.msra.mxu0 0.0
    %411 = vmatprep.subr.mxu0 0.0
    %412 = vmatpush1.xpose.msra.mxu0 0.0
    %413 = vmatprep.subr.mxu0 0.0
    %414 = vmatpush1.xpose.msra.mxu0 0.0
    %415 = vmatprep.subr.mxu0 0.0
    %416 = vmatpush1.xpose.msra.mxu0 0.0
    %417 = vmatprep.subr.mxu0 0.0
    %418 = vmatpush1.xpose.msra.mxu0 0.0
    %419 = vmatprep.subr.mxu0 0.0
    %420 = vmatpush1.xpose.msra.mxu0 0.0
    %421 = vmatprep.subr.mxu0 0.0
    %422 = vmatpush1.xpose.msra.mxu0 0.0
    %423 = vmatprep.subr.mxu0 0.0
    %424 = vmatpush1.xpose.msra.mxu0 0.0
    %425 = vmatprep.subr.mxu0 0.0
    %426 = vmatpush1.xpose.msra.mxu0 0.0
    %427 = vmatprep.subr.mxu0 0.0
    %428 = vmatpush1.xpose.msra.mxu0 0.0
    %429 = vmatprep.subr.mxu0 0.0
    %430 = vmatpush1.xpose.msra.mxu0 0.0
    %431 = vmatprep.subr.mxu0 0.0
    %432 = vmatpush1.xpose.msra.mxu0 0.0
    %433 = vmatprep.subr.mxu0 0.0
    %434 = vmatpush1.xpose.msra.mxu0 0.0
    %435 = vmatprep.subr.mxu0 0.0
    %436 = vmatpush1.xpose.msra.mxu0 0.0
    %437 = vmatprep.subr.mxu0 0.0
    %438 = vmatpush1.xpose.msra.mxu0 0.0
    %439 = vmatprep.subr.mxu0 0.0
    %440 = vmatpush1.xpose.msra.mxu0 0.0
    %441 = vmatprep.subr.mxu0 0.0
    %442 = vmatpush1.xpose.msra.mxu0 0.0
    %443 = vmatprep.subr.mxu0 0.0
    %444 = vmatpush1.xpose.msra.mxu0 0.0
    %445 = vmatprep.subr.mxu0 0.0
    %446 = vmatpush1.xpose.msra.mxu0 0.0
    %447 = vmatprep.subr.mxu0 0.0
    %448 = vmatpush1.xpose.msra.mxu0 0.0
    %449 = vmatprep.subr.mxu0 0.0
    %450 = vmatpush1.xpose.msra.mxu0 0.0
    %451 = vmatprep.subr.mxu0 0.0
    %452 = vmatpush1.xpose.msra.mxu0 0.0
    %453 = vmatprep.subr.mxu0 0.0
    %454 = vmatpush1.xpose.msra.mxu0 0.0
    %455 = vmatprep.subr.mxu0 0.0
    %456 = vmatpush1.xpose.msra.mxu0 0.0
    %457 = vmatprep.subr.mxu0 0.0
    %458 = vmatpush1.xpose.msra.mxu0 0.0
    %459 = vmatprep.subr.mxu0 0.0
    %460 = vmatpush1.xpose.msra.mxu0 0.0
    %461 = vmatprep.subr.mxu0 0.0
    %462 = vmatpush1.xpose.msra.mxu0 0.0
    %463 = vmatprep.mubr.f32.mxu0 0.0
    %v464 = vand.u32 %v89, 4294901760
    %v465 = vsub.f32 %v89, %v464
    %v466 = vand.u32 %v465, 4294901760
    %467 = vmatmul.mubr.f32.gmra.mrb[0].mxu0 %v466
    %v468 = vpop.f32.mrb[0].mxu0
    %v469 = vadd.f32 %v374, %v468
    %v470 = vpop.f32.mrb[0].mxu0
    %471 = vmatprep.mubr.f32.mxu0 0.0
    %v472 = vand.u32 %v92, 4294901760
    %v473 = vsub.f32 %v92, %v472
    %v474 = vand.u32 %v473, 4294901760
    %475 = vmatmul.mubr.f32.gmra.mrb[0].mxu0 %v474
    %v476 = vpop.f32.mrb[0].mxu0
    %v477 = vadd.f32 %v381, %v476
    %v478 = vpop.f32.mrb[0].mxu0
    %479 = vmatprep.mubr.f32.mxu0 0.0
    %v480 = vand.u32 %v95, 4294901760
    %v481 = vsub.f32 %v95, %v480
    %v482 = vand.u32 %v481, 4294901760
    %483 = vmatmul.mubr.f32.gmra.mrb[0].mxu0 %v482
    %v484 = vpop.f32.mrb[0].mxu0
    %v485 = vadd.f32 %v388, %v484
    %v486 = vpop.f32.mrb[0].mxu0
    %487 = vmatprep.mubr.f32.mxu0 0.0
    %v488 = vand.u32 %v98, 4294901760
    %v489 = vsub.f32 %v98, %v488
    %v490 = vand.u32 %v489, 4294901760
    %491 = vmatmul.mubr.f32.gmra.mrb[0].mxu0 %v490
    %v492 = vpop.f32.mrb[0].mxu0
    %v493 = vadd.f32 %v395, %v492
    %v494 = vpop.f32.mrb[0].mxu0
    %495 = vdwg.mxu0
    %496 = vmatprep.subr.mxu0 0.0
    %v497 = vand.u32 %v101, 4294901760
    %v498 = vsub.f32 %v101, %v497
    %v499 = vand.u32 %v498, 4294901760
    %500 = vmatpush1.xpose.msra.mxu0 %v499
    %501 = vmatprep.subr.mxu0 0.0
    %502 = vmatpush1.xpose.msra.mxu0 0.0
    %503 = vmatprep.subr.mxu0 0.0
    %504 = vmatpush1.xpose.msra.mxu0 0.0
    %505 = vmatprep.subr.mxu0 0.0
    %506 = vmatpush1.xpose.msra.mxu0 0.0
    %507 = vmatprep.subr.mxu0 0.0
    %508 = vmatpush1.xpose.msra.mxu0 0.0
    %509 = vmatprep.subr.mxu0 0.0
    %510 = vmatpush1.xpose.msra.mxu0 0.0
    %511 = vmatprep.subr.mxu0 0.0
    %512 = vmatpush1.xpose.msra.mxu0 0.0
    %513 = vmatprep.subr.mxu0 0.0
    %514 = vmatpush1.xpose.msra.mxu0 0.0
    %515 = vmatprep.subr.mxu0 0.0
    %516 = vmatpush1.xpose.msra.mxu0 0.0
    %517 = vmatprep.subr.mxu0 0.0
    %518 = vmatpush1.xpose.msra.mxu0 0.0
    %519 = vmatprep.subr.mxu0 0.0
    %520 = vmatpush1.xpose.msra.mxu0 0.0
    %521 = vmatprep.subr.mxu0 0.0
    %522 = vmatpush1.xpose.msra.mxu0 0.0
    %523 = vmatprep.subr.mxu0 0.0
    %524 = vmatpush1.xpose.msra.mxu0 0.0
    %525 = vmatprep.subr.mxu0 0.0
    %526 = vmatpush1.xpose.msra.mxu0 0.0
    %527 = vmatprep.subr.mxu0 0.0
    %528 = vmatpush1.xpose.msra.mxu0 0.0
    %529 = vmatprep.subr.mxu0 0.0
    %530 = vmatpush1.xpose.msra.mxu0 0.0
    %531 = vmatprep.subr.mxu0 0.0
    %532 = vmatpush1.xpose.msra.mxu0 0.0
    %533 = vmatprep.subr.mxu0 0.0
    %534 = vmatpush1.xpose.msra.mxu0 0.0
    %535 = vmatprep.subr.mxu0 0.0
    %536 = vmatpush1.xpose.msra.mxu0 0.0
    %537 = vmatprep.subr.mxu0 0.0
    %538 = vmatpush1.xpose.msra.mxu0 0.0
    %539 = vmatprep.subr.mxu0 0.0
    %540 = vmatpush1.xpose.msra.mxu0 0.0
    %541 = vmatprep.subr.mxu0 0.0
    %542 = vmatpush1.xpose.msra.mxu0 0.0
    %543 = vmatprep.subr.mxu0 0.0
    %544 = vmatpush1.xpose.msra.mxu0 0.0
    %545 = vmatprep.subr.mxu0 0.0
    %546 = vmatpush1.xpose.msra.mxu0 0.0
    %547 = vmatprep.subr.mxu0 0.0
    %548 = vmatpush1.xpose.msra.mxu0 0.0
    %549 = vmatprep.subr.mxu0 0.0
    %550 = vmatpush1.xpose.msra.mxu0 0.0
    %551 = vmatprep.subr.mxu0 0.0
    %552 = vmatpush1.xpose.msra.mxu0 0.0
    %553 = vmatprep.subr.mxu0 0.0
    %554 = vmatpush1.xpose.msra.mxu0 0.0
    %555 = vmatprep.subr.mxu0 0.0
    %556 = vmatpush1.xpose.msra.mxu0 0.0
    %557 = vmatprep.subr.mxu0 0.0
    %558 = vmatpush1.xpose.msra.mxu0 0.0
    %559 = vmatprep.subr.mxu0 0.0
    %560 = vmatpush1.xpose.msra.mxu0 0.0
    %561 = vmatprep.subr.mxu0 0.0
    %562 = vmatpush1.xpose.msra.mxu0 0.0
    %563 = vmatprep.mubr.f32.mxu0 0.0
    %v564 = vand.u32 %v89, 4294901760
    %565 = vmatmul.mubr.f32.gmra.mrb[0].mxu0 %v564
    %v566 = vpop.f32.mrb[0].mxu0
    %v567 = vadd.f32 %v469, %v566
    %v568 = vpop.f32.mrb[0].mxu0
    %569 = vmatprep.mubr.f32.mxu0 0.0
    %v570 = vand.u32 %v92, 4294901760
    %571 = vmatmul.mubr.f32.gmra.mrb[0].mxu0 %v570
    %v572 = vpop.f32.mrb[0].mxu0
    %v573 = vadd.f32 %v477, %v572
    %v574 = vpop.f32.mrb[0].mxu0
    %575 = vmatprep.mubr.f32.mxu0 0.0
    %v576 = vand.u32 %v95, 4294901760
    %577 = vmatmul.mubr.f32.gmra.mrb[0].mxu0 %v576
    %v578 = vpop.f32.mrb[0].mxu0
    %v579 = vadd.f32 %v485, %v578
    %v580 = vpop.f32.mrb[0].mxu0
    %581 = vmatprep.mubr.f32.mxu0 0.0
    %v582 = vand.u32 %v98, 4294901760
    %583 = vmatmul.mubr.f32.gmra.mrb[0].mxu0 %v582
    %v584 = vpop.f32.mrb[0].mxu0
    %v585 = vadd.f32 %v493, %v584
    %v586 = vpop.f32.mrb[0].mxu0
    %587 = vdwg.mxu0
    %588 = vmatprep.subr.mxu0 0.0
    %v589 = vand.u32 %v101, 4294901760
    %590 = vmatpush1.xpose.msra.mxu0 %v589
    %591 = vmatprep.subr.mxu0 0.0
    %592 = vmatpush1.xpose.msra.mxu0 0.0
    %593 = vmatprep.subr.mxu0 0.0
    %594 = vmatpush1.xpose.msra.mxu0 0.0
    %595 = vmatprep.subr.mxu0 0.0
    %596 = vmatpush1.xpose.msra.mxu0 0.0
    %597 = vmatprep.subr.mxu0 0.0
    %598 = vmatpush1.xpose.msra.mxu0 0.0
    %599 = vmatprep.subr.mxu0 0.0
    %600 = vmatpush1.xpose.msra.mxu0 0.0
    %601 = vmatprep.subr.mxu0 0.0
    %602 = vmatpush1.xpose.msra.mxu0 0.0
    %603 = vmatprep.subr.mxu0 0.0
    %604 = vmatpush1.xpose.msra.mxu0 0.0
    %605 = vmatprep.subr.mxu0 0.0
    %606 = vmatpush1.xpose.msra.mxu0 0.0
    %607 = vmatprep.subr.mxu0 0.0
    %608 = vmatpush1.xpose.msra.mxu0 0.0
    %609 = vmatprep.subr.mxu0 0.0
    %610 = vmatpush1.xpose.msra.mxu0 0.0
    %611 = vmatprep.subr.mxu0 0.0
    %612 = vmatpush1.xpose.msra.mxu0 0.0
    %613 = vmatprep.subr.mxu0 0.0
    %614 = vmatpush1.xpose.msra.mxu0 0.0
    %615 = vmatprep.subr.mxu0 0.0
    %616 = vmatpush1.xpose.msra.mxu0 0.0
    %617 = vmatprep.subr.mxu0 0.0
    %618 = vmatpush1.xpose.msra.mxu0 0.0
    %619 = vmatprep.subr.mxu0 0.0
    %620 = vmatpush1.xpose.msra.mxu0 0.0
    %621 = vmatprep.subr.mxu0 0.0
    %622 = vmatpush1.xpose.msra.mxu0 0.0
    %623 = vmatprep.subr.mxu0 0.0
    %624 = vmatpush1.xpose.msra.mxu0 0.0
    %625 = vmatprep.subr.mxu0 0.0
    %626 = vmatpush1.xpose.msra.mxu0 0.0
    %627 = vmatprep.subr.mxu0 0.0
    %628 = vmatpush1.xpose.msra.mxu0 0.0
    %629 = vmatprep.subr.mxu0 0.0
    %630 = vmatpush1.xpose.msra.mxu0 0.0
    %631 = vmatprep.subr.mxu0 0.0
    %632 = vmatpush1.xpose.msra.mxu0 0.0
    %633 = vmatprep.subr.mxu0 0.0
    %634 = vmatpush1.xpose.msra.mxu0 0.0
    %635 = vmatprep.subr.mxu0 0.0
    %636 = vmatpush1.xpose.msra.mxu0 0.0
    %637 = vmatprep.subr.mxu0 0.0
    %638 = vmatpush1.xpose.msra.mxu0 0.0
    %639 = vmatprep.subr.mxu0 0.0
    %640 = vmatpush1.xpose.msra.mxu0 0.0
    %641 = vmatprep.subr.mxu0 0.0
    %642 = vmatpush1.xpose.msra.mxu0 0.0
    %643 = vmatprep.subr.mxu0 0.0
    %644 = vmatpush1.xpose.msra.mxu0 0.0
    %645 = vmatprep.subr.mxu0 0.0
    %646 = vmatpush1.xpose.msra.mxu0 0.0
    %647 = vmatprep.subr.mxu0 0.0
    %648 = vmatpush1.xpose.msra.mxu0 0.0
    %649 = vmatprep.subr.mxu0 0.0
    %650 = vmatpush1.xpose.msra.mxu0 0.0
    %651 = vmatprep.subr.mxu0 0.0
    %652 = vmatpush1.xpose.msra.mxu0 0.0
    %653 = vmatprep.mubr.f32.mxu0 0.0
    %v654 = vand.u32 %v89, 4294901760
    %655 = vmatmul.mubr.f32.gmra.mrb[0].mxu0 %v654
    %v656 = vpop.f32.mrb[0].mxu0
    %v657 = vadd.f32 %v567, %v656
    %v658 = vpop.f32.mrb[0].mxu0
    %659 = vmatprep.mubr.f32.mxu0 0.0
    %v660 = vand.u32 %v92, 4294901760
    %661 = vmatmul.mubr.f32.gmra.mrb[0].mxu0 %v660
    %v662 = vpop.f32.mrb[0].mxu0
    %v663 = vadd.f32 %v573, %v662
    %v664 = vpop.f32.mrb[0].mxu0
    %665 = vmatprep.mubr.f32.mxu0 0.0
    %v666 = vand.u32 %v95, 4294901760
    %667 = vmatmul.mubr.f32.gmra.mrb[0].mxu0 %v666
    %v668 = vpop.f32.mrb[0].mxu0
    %v669 = vadd.f32 %v579, %v668
    %v670 = vpop.f32.mrb[0].mxu0
    %671 = vmatprep.mubr.f32.mxu0 0.0
    %v672 = vand.u32 %v98, 4294901760
    %673 = vmatmul.mubr.f32.gmra.mrb[0].mxu0 %v672
    %v674 = vpop.f32.mrb[0].mxu0
    %v675 = vadd.f32 %v585, %v674
    %v676 = vpop.f32.mrb[0].mxu0
    %677 = vdwg.mxu0
    %v678 = vld [vmem:[%s2] sm:$0xff]
    %v679 = vld [vmem:[%s2 + $0x8] sm:$0xff]
    %vm680 = vcmask 64512
    %v681 = vsel %vm680, %v657, 0.0
    %v682 = vsel %vm680, %v663, 0.0
    %v683 = vadd.f32 %v681, %v682
    %v684 = vsel %vm680, %v669, 0.0
    %v685 = vadd.f32 %v683, %v684
    %v686 = vsel %vm680, %v675, 0.0
    %v687 = vadd.f32 %v685, %v686
    %v688 = vrot.slane %v687, 4
    %v689 = vadd.f32 %v687, %v688
    %v690 = vrot.slane %v689, 2
    %v691 = vadd.f32 %v689, %v690
    %v692 = vrot.slane %v691, 1
    %v693 = vadd.f32 %v691, %v692
    %v694 = vrcp.pop 32.0
    %v695 = vmul.f32 %v693, %v694
    %v696 = vsub.f32 %v657, %v695
    %v697 = vsub.f32 %v663, %v695
    %v698 = vsub.f32 %v669, %v695
    %v699 = vsub.f32 %v675, %v695
    %v700 = vmul.f32 %v696, %v696
    %v701 = vmul.f32 %v697, %v697
    %v702 = vmul.f32 %v698, %v698
    %v703 = vmul.f32 %v699, %v699
    %v704 = vsel %vm680, %v700, 0.0
    %v705 = vsel %vm680, %v701, 0.0
    %v706 = vadd.f32 %v704, %v705
    %v707 = vsel %vm680, %v702, 0.0
    %v708 = vadd.f32 %v706, %v707
    %v709 = vsel %vm680, %v703, 0.0
    %v710 = vadd.f32 %v708, %v709
    %v711 = vrot.slane %v710, 4
    %v712 = vadd.f32 %v710, %v711
    %v713 = vrot.slane %v712, 2
    %v714 = vadd.f32 %v712, %v713
    %v715 = vrot.slane %v714, 1
    %v716 = vadd.f32 %v714, %v715
    %v717 = vmul.f32 %v716, %v694
    %v718 = vadd.f32 %v717, 1e-05
    %v719 = vrsqrt.pop %v718
    %v720 = vmul.f32 %v696, %v719
    %v721 = vmul.f32 %v697, %v719
    %v722 = vmul.f32 %v698, %v719
    %v723 = vmul.f32 %v699, %v719
    %724 = vset.pattern.permute.xlu0 1
    %725 = vperm.xlu0 %724, %v64
    %v726 = vpop.permute.xlu0 %725
    %728 = vset.pattern.permute.xlu0 1
    %729 = vperm.xlu0 %728, %v65
    %v730 = vpop.permute.xlu0 %729
    %732 = vset.pattern.permute.xlu0 1
    %733 = vperm.xlu0 %732, %v66
    %v734 = vpop.permute.xlu0 %733
    %736 = vset.pattern.permute.xlu0 1
    %737 = vperm.xlu0 %736, %v67
    %v738 = vpop.permute.xlu0 %737
    %v740 = vmul.f32 %v720, %v726
    %v741 = vmul.f32 %v721, %v730
    %v742 = vmul.f32 %v722, %v734
    %v743 = vmul.f32 %v723, %v738
    %744 = vset.pattern.permute.xlu0 2
    %745 = vperm.xlu0 %744, %v64
    %v746 = vpop.permute.xlu0 %745
    %748 = vset.pattern.permute.xlu0 2
    %749 = vperm.xlu0 %748, %v65
    %v750 = vpop.permute.xlu0 %749
    %752 = vset.pattern.permute.xlu0 2
    %753 = vperm.xlu0 %752, %v66
    %v754 = vpop.permute.xlu0 %753
    %756 = vset.pattern.permute.xlu0 2
    %757 = vperm.xlu0 %756, %v67
    %v758 = vpop.permute.xlu0 %757
    %v760 = vadd.f32 %v740, %v746
    %v761 = vadd.f32 %v741, %v750
    %v762 = vadd.f32 %v742, %v754
    %v763 = vadd.f32 %v743, %v758
    %v764 = vmax.f32 %v760, 0.0
    %v765 = vmax.f32 %v761, 0.0
    %v766 = vmax.f32 %v762, 0.0
    %v767 = vmax.f32 %v763, 0.0
    %s768 = scalar_lea.vmem [#allocation2], 32
    %v769 = vld [vmem:[%s768] sm:$0xff]
    %v770 = vld [vmem:[%s768 + $0x8] sm:$0xff]
    %772 = vset.pattern.permute.xlu0 3
    %773 = vperm.xlu0 %772, %v678
    %v774 = vpop.permute.xlu0 %773
    %777 = vset.pattern.permute.xlu0 3
    %778 = vperm.xlu0 %777, %v679
    %v779 = vpop.permute.xlu0 %778
    %vm781 = vcmask 261120
    %v783 = vsel %vm781, %v769, 0
    %v786 = vsel %vm781, %v770, 0
    %788 = vmatprep.subr.mxu0 0.0
    %v789 = vand.u32 %v764, 4294901760
    %790 = vmatpush1.msra.mxu0 %v789
    %791 = vmatprep.subr.mxu0 0.0
    %v792 = vand.u32 %v765, 4294901760
    %793 = vmatpush1.msra.mxu0 %v792
    %794 = vmatprep.subr.mxu0 0.0
    %v795 = vand.u32 %v766, 4294901760
    %796 = vmatpush1.msra.mxu0 %v795
    %797 = vmatprep.subr.mxu0 0.0
    %v798 = vand.u32 %v767, 4294901760
    %799 = vmatpush1.msra.mxu0 %v798
    %800 = vmatprep.subr.mxu0 0.0
    %801 = vmatpush1.msra.mxu0 0.0
    %802 = vmatprep.subr.mxu0 0.0
    %803 = vmatpush1.msra.mxu0 0.0
    %804 = vmatprep.subr.mxu0 0.0
    %805 = vmatpush1.msra.mxu0 0.0
    %806 = vmatprep.subr.mxu0 0.0
    %807 = vmatpush1.msra.mxu0 0.0
    %808 = vmatprep.subr.mxu0 0.0
    %809 = vmatpush1.msra.mxu0 0.0
    %810 = vmatprep.subr.mxu0 0.0
    %811 = vmatpush1.msra.mxu0 0.0
    %812 = vmatprep.subr.mxu0 0.0
    %813 = vmatpush1.msra.mxu0 0.0
    %814 = vmatprep.subr.mxu0 0.0
    %815 = vmatpush1.msra.mxu0 0.0
    %816 = vmatprep.subr.mxu0 0.0
    %817 = vmatpush1.msra.mxu0 0.0
    %818 = vmatprep.subr.mxu0 0.0
    %819 = vmatpush1.msra.mxu0 0.0
    %820 = vmatprep.subr.mxu0 0.0
    %821 = vmatpush1.msra.mxu0 0.0
    %822 = vmatprep.subr.mxu0 0.0
    %823 = vmatpush1.msra.mxu0 0.0
    %824 = vmatprep.subr.mxu0 0.0
    %825 = vmatpush1.msra.mxu0 0.0
    %826 = vmatprep.subr.mxu0 0.0
    %827 = vmatpush1.msra.mxu0 0.0
    %828 = vmatprep.subr.mxu0 0.0
    %829 = vmatpush1.msra.mxu0 0.0
    %830 = vmatprep.subr.mxu0 0.0
    %831 = vmatpush1.msra.mxu0 0.0
    %832 = vmatprep.subr.mxu0 0.0
    %833 = vmatpush1.msra.mxu0 0.0
    %834 = vmatprep.subr.mxu0 0.0
    %835 = vmatpush1.msra.mxu0 0.0
    %836 = vmatprep.subr.mxu0 0.0
    %837 = vmatpush1.msra.mxu0 0.0
    %838 = vmatprep.subr.mxu0 0.0
    %839 = vmatpush1.msra.mxu0 0.0
    %840 = vmatprep.subr.mxu0 0.0
    %841 = vmatpush1.msra.mxu0 0.0
    %842 = vmatprep.subr.mxu0 0.0
    %843 = vmatpush1.msra.mxu0 0.0
    %844 = vmatprep.subr.mxu0 0.0
    %845 = vmatpush1.msra.mxu0 0.0
    %846 = vmatprep.subr.mxu0 0.0
    %847 = vmatpush1.msra.mxu0 0.0
    %848 = vmatprep.subr.mxu0 0.0
    %849 = vmatpush1.msra.mxu0 0.0
    %850 = vmatprep.subr.mxu0 0.0
    %851 = vmatpush1.msra.mxu0 0.0
    %852 = vmatprep.subr.mxu0 0.0
    %853 = vmatpush1.msra.mxu0 0.0
    %854 = vmatprep.subr.mxu0 0.0
    %855 = vmatpush1.msra.mxu0 0.0
    %856 = vmatprep.mubr.f32.mxu0 0.0
    %v857 = vand.u32 %v783, 4294901760
    %v858 = vsub.f32 %v783, %v857
    %v859 = vand.u32 %v858, 4294901760
    %v860 = vsub.f32 %v858, %v859
    %v861 = vand.u32 %v860, 4294901760
    %862 = vmatmul.mubr.f32.gmra.mrb[0].mxu0 %v861
    %v863 = vpop.f32.mrb[0].mxu0
    %v864 = vadd.f32 %v774, %v863
    %v865 = vpop.f32.mrb[0].mxu0
    %866 = vmatprep.mubr.f32.mxu0 0.0
    %v867 = vand.u32 %v786, 4294901760
    %v868 = vsub.f32 %v786, %v867
    %v869 = vand.u32 %v868, 4294901760
    %v870 = vsub.f32 %v868, %v869
    %v871 = vand.u32 %v870, 4294901760
    %872 = vmatmul.mubr.f32.gmra.mrb[0].mxu0 %v871
    %v873 = vpop.f32.mrb[0].mxu0
    %v874 = vadd.f32 %v779, %v873
    %v875 = vpop.f32.mrb[0].mxu0
    %876 = vdwg.mxu0
    %877 = vmatprep.subr.mxu0 0.0
    %v878 = vand.u32 %v764, 4294901760
    %v879 = vsub.f32 %v764, %v878
    %v880 = vand.u32 %v879, 4294901760
    %v881 = vsub.f32 %v879, %v880
    %v882 = vand.u32 %v881, 4294901760
    %883 = vmatpush1.msra.mxu0 %v882
    %884 = vmatprep.subr.mxu0 0.0
    %v885 = vand.u32 %v765, 4294901760
    %v886 = vsub.f32 %v765, %v885
    %v887 = vand.u32 %v886, 4294901760
    %v888 = vsub.f32 %v886, %v887
    %v889 = vand.u32 %v888, 4294901760
    %890 = vmatpush1.msra.mxu0 %v889
    %891 = vmatprep.subr.mxu0 0.0
    %v892 = vand.u32 %v766, 4294901760
    %v893 = vsub.f32 %v766, %v892
    %v894 = vand.u32 %v893, 4294901760
    %v895 = vsub.f32 %v893, %v894
    %v896 = vand.u32 %v895, 4294901760
    %897 = vmatpush1.msra.mxu0 %v896
    %898 = vmatprep.subr.mxu0 0.0
    %v899 = vand.u32 %v767, 4294901760
    %v900 = vsub.f32 %v767, %v899
    %v901 = vand.u32 %v900, 4294901760
    %v902 = vsub.f32 %v900, %v901
    %v903 = vand.u32 %v902, 4294901760
    %904 = vmatpush1.msra.mxu0 %v903
    %905 = vmatprep.subr.mxu0 0.0
    %906 = vmatpush1.msra.mxu0 0.0
    %907 = vmatprep.subr.mxu0 0.0
    %908 = vmatpush1.msra.mxu0 0.0
    %909 = vmatprep.subr.mxu0 0.0
    %910 = vmatpush1.msra.mxu0 0.0
    %911 = vmatprep.subr.mxu0 0.0
    %912 = vmatpush1.msra.mxu0 0.0
    %913 = vmatprep.subr.mxu0 0.0
    %914 = vmatpush1.msra.mxu0 0.0
    %915 = vmatprep.subr.mxu0 0.0
    %916 = vmatpush1.msra.mxu0 0.0
    %917 = vmatprep.subr.mxu0 0.0
    %918 = vmatpush1.msra.mxu0 0.0
    %919 = vmatprep.subr.mxu0 0.0
    %920 = vmatpush1.msra.mxu0 0.0
    %921 = vmatprep.subr.mxu0 0.0
    %922 = vmatpush1.msra.mxu0 0.0
    %923 = vmatprep.subr.mxu0 0.0
    %924 = vmatpush1.msra.mxu0 0.0
    %925 = vmatprep.subr.mxu0 0.0
    %926 = vmatpush1.msra.mxu0 0.0
    %927 = vmatprep.subr.mxu0 0.0
    %928 = vmatpush1.msra.mxu0 0.0
    %929 = vmatprep.subr.mxu0 0.0
    %930 = vmatpush1.msra.mxu0 0.0
    %931 = vmatprep.subr.mxu0 0.0
    %932 = vmatpush1.msra.mxu0 0.0
    %933 = vmatprep.subr.mxu0 0.0
    %934 = vmatpush1.msra.mxu0 0.0
    %935 = vmatprep.subr.mxu0 0.0
    %936 = vmatpush1.msra.mxu0 0.0
    %937 = vmatprep.subr.mxu0 0.0
    %938 = vmatpush1.msra.mxu0 0.0
    %939 = vmatprep.subr.mxu0 0.0
    %940 = vmatpush1.msra.mxu0 0.0
    %941 = vmatprep.subr.mxu0 0.0
    %942 = vmatpush1.msra.mxu0 0.0
    %943 = vmatprep.subr.mxu0 0.0
    %944 = vmatpush1.msra.mxu0 0.0
    %945 = vmatprep.subr.mxu0 0.0
    %946 = vmatpush1.msra.mxu0 0.0
    %947 = vmatprep.subr.mxu0 0.0
    %948 = vmatpush1.msra.mxu0 0.0
    %949 = vmatprep.subr.mxu0 0.0
    %950 = vmatpush1.msra.mxu0 0.0
    %951 = vmatprep.subr.mxu0 0.0
    %952 = vmatpush1.msra.mxu0 0.0
    %953 = vmatprep.subr.mxu0 0.0
    %954 = vmatpush1.msra.mxu0 0.0
    %955 = vmatprep.subr.mxu0 0.0
    %956 = vmatpush1.msra.mxu0 0.0
    %957 = vmatprep.subr.mxu0 0.0
    %958 = vmatpush1.msra.mxu0 0.0
    %959 = vmatprep.subr.mxu0 0.0
    %960 = vmatpush1.msra.mxu0 0.0
    %961 = vmatprep.mubr.f32.mxu0 0.0
    %v962 = vand.u32 %v783, 4294901760
    %963 = vmatmul.mubr.f32.gmra.mrb[0].mxu0 %v962
    %v964 = vpop.f32.mrb[0].mxu0
    %v965 = vadd.f32 %v864, %v964
    %v966 = vpop.f32.mrb[0].mxu0
    %967 = vmatprep.mubr.f32.mxu0 0.0
    %v968 = vand.u32 %v786, 4294901760
    %969 = vmatmul.mubr.f32.gmra.mrb[0].mxu0 %v968
    %v970 = vpop.f32.mrb[0].mxu0
    %v971 = vadd.f32 %v874, %v970
    %v972 = vpop.f32.mrb[0].mxu0
    %973 = vdwg.mxu0
    %974 = vmatprep.subr.mxu0 0.0
    %v975 = vand.u32 %v764, 4294901760
    %v976 = vsub.f32 %v764, %v975
    %977 = vmatpush1.msra.mxu0 %v976
    %978 = vmatprep.subr.mxu0 0.0
    %v979 = vand.u32 %v765, 4294901760
    %v980 = vsub.f32 %v765, %v979
    %981 = vmatpush1.msra.mxu0 %v980
    %982 = vmatprep.subr.mxu0 0.0
    %v983 = vand.u32 %v766, 4294901760
    %v984 = vsub.f32 %v766, %v983
    %985 = vmatpush1.msra.mxu0 %v984
    %986 = vmatprep.subr.mxu0 0.0
    %v987 = vand.u32 %v767, 4294901760
    %v988 = vsub.f32 %v767, %v987
    %989 = vmatpush1.msra.mxu0 %v988
    %990 = vmatprep.subr.mxu0 0.0
    %991 = vmatpush1.msra.mxu0 0.0
    %992 = vmatprep.subr.mxu0 0.0
    %993 = vmatpush1.msra.mxu0 0.0
    %994 = vmatprep.subr.mxu0 0.0
    %995 = vmatpush1.msra.mxu0 0.0
    %996 = vmatprep.subr.mxu0 0.0
    %997 = vmatpush1.msra.mxu0 0.0
    %998 = vmatprep.subr.mxu0 0.0
    %999 = vmatpush1.msra.mxu0 0.0
    %1000 = vmatprep.subr.mxu0 0.0
    %1001 = vmatpush1.msra.mxu0 0.0
    %1002 = vmatprep.subr.mxu0 0.0
    %1003 = vmatpush1.msra.mxu0 0.0
    %1004 = vmatprep.subr.mxu0 0.0
    %1005 = vmatpush1.msra.mxu0 0.0
    %1006 = vmatprep.subr.mxu0 0.0
    %1007 = vmatpush1.msra.mxu0 0.0
    %1008 = vmatprep.subr.mxu0 0.0
    %1009 = vmatpush1.msra.mxu0 0.0
    %1010 = vmatprep.subr.mxu0 0.0
    %1011 = vmatpush1.msra.mxu0 0.0
    %1012 = vmatprep.subr.mxu0 0.0
    %1013 = vmatpush1.msra.mxu0 0.0
    %1014 = vmatprep.subr.mxu0 0.0
    %1015 = vmatpush1.msra.mxu0 0.0
    %1016 = vmatprep.subr.mxu0 0.0
    %1017 = vmatpush1.msra.mxu0 0.0
    %1018 = vmatprep.subr.mxu0 0.0
    %1019 = vmatpush1.msra.mxu0 0.0
    %1020 = vmatprep.subr.mxu0 0.0
    %1021 = vmatpush1.msra.mxu0 0.0
    %1022 = vmatprep.subr.mxu0 0.0
    %1023 = vmatpush1.msra.mxu0 0.0
    %1024 = vmatprep.subr.mxu0 0.0
    %1025 = vmatpush1.msra.mxu0 0.0
    %1026 = vmatprep.subr.mxu0 0.0
    %1027 = vmatpush1.msra.mxu0 0.0
    %1028 = vmatprep.subr.mxu0 0.0
    %1029 = vmatpush1.msra.mxu0 0.0
    %1030 = vmatprep.subr.mxu0 0.0
    %1031 = vmatpush1.msra.mxu0 0.0
    %1032 = vmatprep.subr.mxu0 0.0
    %1033 = vmatpush1.msra.mxu0 0.0
    %1034 = vmatprep.subr.mxu0 0.0
    %1035 = vmatpush1.msra.mxu0 0.0
    %1036 = vmatprep.subr.mxu0 0.0
    %1037 = vmatpush1.msra.mxu0 0.0
    %1038 = vmatprep.subr.mxu0 0.0
    %1039 = vmatpush1.msra.mxu0 0.0
    %1040 = vmatprep.subr.mxu0 0.0
    %1041 = vmatpush1.msra.mxu0 0.0
    %1042 = vmatprep.subr.mxu0 0.0
    %1043 = vmatpush1.msra.mxu0 0.0
    %1044 = vmatprep.subr.mxu0 0.0
    %1045 = vmatpush1.msra.mxu0 0.0
    %1046 = vmatprep.mubr.f32.mxu0 0.0
    %v1047 = vand.u32 %v783, 4294901760
    %v1048 = vsub.f32 %v783, %v1047
    %1049 = vmatmul.mubr.f32.gmra.mrb[0].mxu0 %v1048
    %v1050 = vpop.f32.mrb[0].mxu0
    %v1051 = vadd.f32 %v965, %v1050
    %v1052 = vpop.f32.mrb[0].mxu0
    %1053 = vmatprep.mubr.f32.mxu0 0.0
    %v1054 = vand.u32 %v786, 4294901760
    %v1055 = vsub.f32 %v786, %v1054
    %1056 = vmatmul.mubr.f32.gmra.mrb[0].mxu0 %v1055
    %v1057 = vpop.f32.mrb[0].mxu0
    %v1058 = vadd.f32 %v971, %v1057
    %v1059 = vpop.f32.mrb[0].mxu0
    %1060 = vdwg.mxu0
    %1061 = vmatprep.subr.mxu0 0.0
    %v1062 = vand.u32 %v764, 4294901760
    %1063 = vmatpush1.msra.mxu0 %v1062
    %1064 = vmatprep.subr.mxu0 0.0
    %v1065 = vand.u32 %v765, 4294901760
    %1066 = vmatpush1.msra.mxu0 %v1065
    %1067 = vmatprep.subr.mxu0 0.0
    %v1068 = vand.u32 %v766, 4294901760
    %1069 = vmatpush1.msra.mxu0 %v1068
    %1070 = vmatprep.subr.mxu0 0.0
    %v1071 = vand.u32 %v767, 4294901760
    %1072 = vmatpush1.msra.mxu0 %v1071
    %1073 = vmatprep.subr.mxu0 0.0
    %1074 = vmatpush1.msra.mxu0 0.0
    %1075 = vmatprep.subr.mxu0 0.0
    %1076 = vmatpush1.msra.mxu0 0.0
    %1077 = vmatprep.subr.mxu0 0.0
    %1078 = vmatpush1.msra.mxu0 0.0
    %1079 = vmatprep.subr.mxu0 0.0
    %1080 = vmatpush1.msra.mxu0 0.0
    %1081 = vmatprep.subr.mxu0 0.0
    %1082 = vmatpush1.msra.mxu0 0.0
    %1083 = vmatprep.subr.mxu0 0.0
    %1084 = vmatpush1.msra.mxu0 0.0
    %1085 = vmatprep.subr.mxu0 0.0
    %1086 = vmatpush1.msra.mxu0 0.0
    %1087 = vmatprep.subr.mxu0 0.0
    %1088 = vmatpush1.msra.mxu0 0.0
    %1089 = vmatprep.subr.mxu0 0.0
    %1090 = vmatpush1.msra.mxu0 0.0
    %1091 = vmatprep.subr.mxu0 0.0
    %1092 = vmatpush1.msra.mxu0 0.0
    %1093 = vmatprep.subr.mxu0 0.0
    %1094 = vmatpush1.msra.mxu0 0.0
    %1095 = vmatprep.subr.mxu0 0.0
    %1096 = vmatpush1.msra.mxu0 0.0
    %1097 = vmatprep.subr.mxu0 0.0
    %1098 = vmatpush1.msra.mxu0 0.0
    %1099 = vmatprep.subr.mxu0 0.0
    %1100 = vmatpush1.msra.mxu0 0.0
    %1101 = vmatprep.subr.mxu0 0.0
    %1102 = vmatpush1.msra.mxu0 0.0
    %1103 = vmatprep.subr.mxu0 0.0
    %1104 = vmatpush1.msra.mxu0 0.0
    %1105 = vmatprep.subr.mxu0 0.0
    %1106 = vmatpush1.msra.mxu0 0.0
    %1107 = vmatprep.subr.mxu0 0.0
    %1108 = vmatpush1.msra.mxu0 0.0
    %1109 = vmatprep.subr.mxu0 0.0
    %1110 = vmatpush1.msra.mxu0 0.0
    %1111 = vmatprep.subr.mxu0 0.0
    %1112 = vmatpush1.msra.mxu0 0.0
    %1113 = vmatprep.subr.mxu0 0.0
    %1114 = vmatpush1.msra.mxu0 0.0
    %1115 = vmatprep.subr.mxu0 0.0
    %1116 = vmatpush1.msra.mxu0 0.0
    %1117 = vmatprep.subr.mxu0 0.0
    %1118 = vmatpush1.msra.mxu0 0.0
    %1119 = vmatprep.subr.mxu0 0.0
    %1120 = vmatpush1.msra.mxu0 0.0
    %1121 = vmatprep.subr.mxu0 0.0
    %1122 = vmatpush1.msra.mxu0 0.0
    %1123 = vmatprep.subr.mxu0 0.0
    %1124 = vmatpush1.msra.mxu0 0.0
    %1125 = vmatprep.subr.mxu0 0.0
    %1126 = vmatpush1.msra.mxu0 0.0
    %1127 = vmatprep.subr.mxu0 0.0
    %1128 = vmatpush1.msra.mxu0 0.0
    %1129 = vmatprep.mubr.f32.mxu0 0.0
    %v1130 = vand.u32 %v783, 4294901760
    %v1131 = vsub.f32 %v783, %v1130
    %v1132 = vand.u32 %v1131, 4294901760
    %1133 = vmatmul.mubr.f32.gmra.mrb[0].mxu0 %v1132
    %v1134 = vpop.f32.mrb[0].mxu0
    %v1135 = vadd.f32 %v1051, %v1134
    %v1136 = vpop.f32.mrb[0].mxu0
    %1137 = vmatprep.mubr.f32.mxu0 0.0
    %v1138 = vand.u32 %v786, 4294901760
    %v1139 = vsub.f32 %v786, %v1138
    %v1140 = vand.u32 %v1139, 4294901760
    %1141 = vmatmul.mubr.f32.gmra.mrb[0].mxu0 %v1140
    %v1142 = vpop.f32.mrb[0].mxu0
    %v1143 = vadd.f32 %v1058, %v1142
    %v1144 = vpop.f32.mrb[0].mxu0
    %1145 = vdwg.mxu0
    %1146 = vmatprep.subr.mxu0 0.0
    %v1147 = vand.u32 %v764, 4294901760
    %v1148 = vsub.f32 %v764, %v1147
    %v1149 = vand.u32 %v1148, 4294901760
    %1150 = vmatpush1.msra.mxu0 %v1149
    %1151 = vmatprep.subr.mxu0 0.0
    %v1152 = vand.u32 %v765, 4294901760
    %v1153 = vsub.f32 %v765, %v1152
    %v1154 = vand.u32 %v1153, 4294901760
    %1155 = vmatpush1.msra.mxu0 %v1154
    %1156 = vmatprep.subr.mxu0 0.0
    %v1157 = vand.u32 %v766, 4294901760
    %v1158 = vsub.f32 %v766, %v1157
    %v1159 = vand.u32 %v1158, 4294901760
    %1160 = vmatpush1.msra.mxu0 %v1159
    %1161 = vmatprep.subr.mxu0 0.0
    %v1162 = vand.u32 %v767, 4294901760
    %v1163 = vsub.f32 %v767, %v1162
    %v1164 = vand.u32 %v1163, 4294901760
    %1165 = vmatpush1.msra.mxu0 %v1164
    %1166 = vmatprep.subr.mxu0 0.0
    %1167 = vmatpush1.msra.mxu0 0.0
    %1168 = vmatprep.subr.mxu0 0.0
    %1169 = vmatpush1.msra.mxu0 0.0
    %1170 = vmatprep.subr.mxu0 0.0
    %1171 = vmatpush1.msra.mxu0 0.0
    %1172 = vmatprep.subr.mxu0 0.0
    %1173 = vmatpush1.msra.mxu0 0.0
    %1174 = vmatprep.subr.mxu0 0.0
    %1175 = vmatpush1.msra.mxu0 0.0
    %1176 = vmatprep.subr.mxu0 0.0
    %1177 = vmatpush1.msra.mxu0 0.0
    %1178 = vmatprep.subr.mxu0 0.0
    %1179 = vmatpush1.msra.mxu0 0.0
    %1180 = vmatprep.subr.mxu0 0.0
    %1181 = vmatpush1.msra.mxu0 0.0
    %1182 = vmatprep.subr.mxu0 0.0
    %1183 = vmatpush1.msra.mxu0 0.0
    %1184 = vmatprep.subr.mxu0 0.0
    %1185 = vmatpush1.msra.mxu0 0.0
    %1186 = vmatprep.subr.mxu0 0.0
    %1187 = vmatpush1.msra.mxu0 0.0
    %1188 = vmatprep.subr.mxu0 0.0
    %1189 = vmatpush1.msra.mxu0 0.0
    %1190 = vmatprep.subr.mxu0 0.0
    %1191 = vmatpush1.msra.mxu0 0.0
    %1192 = vmatprep.subr.mxu0 0.0
    %1193 = vmatpush1.msra.mxu0 0.0
    %1194 = vmatprep.subr.mxu0 0.0
    %1195 = vmatpush1.msra.mxu0 0.0
    %1196 = vmatprep.subr.mxu0 0.0
    %1197 = vmatpush1.msra.mxu0 0.0
    %1198 = vmatprep.subr.mxu0 0.0
    %1199 = vmatpush1.msra.mxu0 0.0
    %1200 = vmatprep.subr.mxu0 0.0
    %1201 = vmatpush1.msra.mxu0 0.0
    %1202 = vmatprep.subr.mxu0 0.0
    %1203 = vmatpush1.msra.mxu0 0.0
    %1204 = vmatprep.subr.mxu0 0.0
    %1205 = vmatpush1.msra.mxu0 0.0
    %1206 = vmatprep.subr.mxu0 0.0
    %1207 = vmatpush1.msra.mxu0 0.0
    %1208 = vmatprep.subr.mxu0 0.0
    %1209 = vmatpush1.msra.mxu0 0.0
    %1210 = vmatprep.subr.mxu0 0.0
    %1211 = vmatpush1.msra.mxu0 0.0
    %1212 = vmatprep.subr.mxu0 0.0
    %1213 = vmatpush1.msra.mxu0 0.0
    %1214 = vmatprep.subr.mxu0 0.0
    %1215 = vmatpush1.msra.mxu0 0.0
    %1216 = vmatprep.subr.mxu0 0.0
    %1217 = vmatpush1.msra.mxu0 0.0
    %1218 = vmatprep.subr.mxu0 0.0
    %1219 = vmatpush1.msra.mxu0 0.0
    %1220 = vmatprep.subr.mxu0 0.0
    %1221 = vmatpush1.msra.mxu0 0.0
    %1222 = vmatprep.mubr.f32.mxu0 0.0
    %v1223 = vand.u32 %v783, 4294901760
    %1224 = vmatmul.mubr.f32.gmra.mrb[0].mxu0 %v1223
    %v1225 = vpop.f32.mrb[0].mxu0
    %v1226 = vadd.f32 %v1135, %v1225
    %v1227 = vpop.f32.mrb[0].mxu0
    %1228 = vmatprep.mubr.f32.mxu0 0.0
    %v1229 = vand.u32 %v786, 4294901760
    %1230 = vmatmul.mubr.f32.gmra.mrb[0].mxu0 %v1229
    %v1231 = vpop.f32.mrb[0].mxu0
    %v1232 = vadd.f32 %v1143, %v1231
    %v1233 = vpop.f32.mrb[0].mxu0
    %1234 = vdwg.mxu0
    %1235 = vmatprep.subr.mxu0 0.0
    %v1236 = vand.u32 %v764, 4294901760
    %1237 = vmatpush1.msra.mxu0 %v1236
    %1238 = vmatprep.subr.mxu0 0.0
    %v1239 = vand.u32 %v765, 4294901760
    %1240 = vmatpush1.msra.mxu0 %v1239
    %1241 = vmatprep.subr.mxu0 0.0
    %v1242 = vand.u32 %v766, 4294901760
    %1243 = vmatpush1.msra.mxu0 %v1242
    %1244 = vmatprep.subr.mxu0 0.0
    %v1245 = vand.u32 %v767, 4294901760
    %1246 = vmatpush1.msra.mxu0 %v1245
    %1247 = vmatprep.subr.mxu0 0.0
    %1248 = vmatpush1.msra.mxu0 0.0
    %1249 = vmatprep.subr.mxu0 0.0
    %1250 = vmatpush1.msra.mxu0 0.0
    %1251 = vmatprep.subr.mxu0 0.0
    %1252 = vmatpush1.msra.mxu0 0.0
    %1253 = vmatprep.subr.mxu0 0.0
    %1254 = vmatpush1.msra.mxu0 0.0
    %1255 = vmatprep.subr.mxu0 0.0
    %1256 = vmatpush1.msra.mxu0 0.0
    %1257 = vmatprep.subr.mxu0 0.0
    %1258 = vmatpush1.msra.mxu0 0.0
    %1259 = vmatprep.subr.mxu0 0.0
    %1260 = vmatpush1.msra.mxu0 0.0
    %1261 = vmatprep.subr.mxu0 0.0
    %1262 = vmatpush1.msra.mxu0 0.0
    %1263 = vmatprep.subr.mxu0 0.0
    %1264 = vmatpush1.msra.mxu0 0.0
    %1265 = vmatprep.subr.mxu0 0.0
    %1266 = vmatpush1.msra.mxu0 0.0
    %1267 = vmatprep.subr.mxu0 0.0
    %1268 = vmatpush1.msra.mxu0 0.0
    %1269 = vmatprep.subr.mxu0 0.0
    %1270 = vmatpush1.msra.mxu0 0.0
    %1271 = vmatprep.subr.mxu0 0.0
    %1272 = vmatpush1.msra.mxu0 0.0
    %1273 = vmatprep.subr.mxu0 0.0
    %1274 = vmatpush1.msra.mxu0 0.0
    %1275 = vmatprep.subr.mxu0 0.0
    %1276 = vmatpush1.msra.mxu0 0.0
    %1277 = vmatprep.subr.mxu0 0.0
    %1278 = vmatpush1.msra.mxu0 0.0
    %1279 = vmatprep.subr.mxu0 0.0
    %1280 = vmatpush1.msra.mxu0 0.0
    %1281 = vmatprep.subr.mxu0 0.0
    %1282 = vmatpush1.msra.mxu0 0.0
    %1283 = vmatprep.subr.mxu0 0.0
    %1284 = vmatpush1.msra.mxu0 0.0
    %1285 = vmatprep.subr.mxu0 0.0
    %1286 = vmatpush1.msra.mxu0 0.0
    %1287 = vmatprep.subr.mxu0 0.0
    %1288 = vmatpush1.msra.mxu0 0.0
    %1289 = vmatprep.subr.mxu0 0.0
    %1290 = vmatpush1.msra.mxu0 0.0
    %1291 = vmatprep.subr.mxu0 0.0
    %1292 = vmatpush1.msra.mxu0 0.0
    %1293 = vmatprep.subr.mxu0 0.0
    %1294 = vmatpush1.msra.mxu0 0.0
    %1295 = vmatprep.subr.mxu0 0.0
    %1296 = vmatpush1.msra.mxu0 0.0
    %1297 = vmatprep.subr.mxu0 0.0
    %1298 = vmatpush1.msra.mxu0 0.0
    %1299 = vmatprep.subr.mxu0 0.0
    %1300 = vmatpush1.msra.mxu0 0.0
    %1301 = vmatprep.subr.mxu0 0.0
    %1302 = vmatpush1.msra.mxu0 0.0
    %1303 = vmatprep.mubr.f32.mxu0 0.0
    %v1304 = vand.u32 %v783, 4294901760
    %1305 = vmatmul.mubr.f32.gmra.mrb[0].mxu0 %v1304
    %v1306 = vpop.f32.mrb[0].mxu0
    %v1307 = vadd.f32 %v1226, %v1306
    %v1308 = vpop.f32.mrb[0].mxu0
    %1309 = vmatprep.mubr.f32.mxu0 0.0
    %v1310 = vand.u32 %v786, 4294901760
    %1311 = vmatmul.mubr.f32.gmra.mrb[0].mxu0 %v1310
    %v1312 = vpop.f32.mrb[0].mxu0
    %v1313 = vadd.f32 %v1232, %v1312
    %v1314 = vpop.f32.mrb[0].mxu0
    %1315 = vdwg.mxu0
    %v1316 = vld [vmem:[%s2] sm:$0xff]
    %v1317 = vsel %vm680, %v1307, 0.0
    %v1318 = vsel %vm680, %v1313, 0.0
    %v1319 = vadd.f32 %v1317, %v1318
    %v1320 = vrot.slane %v1319, 4
    %v1321 = vadd.f32 %v1319, %v1320
    %v1322 = vrot.slane %v1321, 2
    %v1323 = vadd.f32 %v1321, %v1322
    %v1324 = vrot.slane %v1323, 1
    %v1325 = vadd.f32 %v1323, %v1324
    %v1326 = vrcp.pop 16.0
    %v1327 = vmul.f32 %v1325, %v1326
    %v1328 = vsub.f32 %v1307, %v1327
    %v1329 = vsub.f32 %v1313, %v1327
    %v1330 = vmul.f32 %v1328, %v1328
    %v1331 = vmul.f32 %v1329, %v1329
    %v1332 = vsel %vm680, %v1330, 0.0
    %v1333 = vsel %vm680, %v1331, 0.0
    %v1334 = vadd.f32 %v1332, %v1333
    %v1335 = vrot.slane %v1334, 4
    %v1336 = vadd.f32 %v1334, %v1335
    %v1337 = vrot.slane %v1336, 2
    %v1338 = vadd.f32 %v1336, %v1337
    %v1339 = vrot.slane %v1338, 1
    %v1340 = vadd.f32 %v1338, %v1339
    %v1341 = vmul.f32 %v1340, %v1326
    %v1342 = vadd.f32 %v1341, 1e-05
    %v1343 = vrsqrt.pop %v1342
    %v1344 = vmul.f32 %v1328, %v1343
    %v1345 = vmul.f32 %v1329, %v1343
    %1346 = vset.pattern.permute.xlu0 4
    %1347 = vperm.xlu0 %1346, %v678
    %v1348 = vpop.permute.xlu0 %1347
    %1350 = vset.pattern.permute.xlu0 4
    %1351 = vperm.xlu0 %1350, %v679
    %v1352 = vpop.permute.xlu0 %1351
    %v1354 = vmul.f32 %v1344, %v1348
    %v1355 = vmul.f32 %v1345, %v1352
    %1356 = vset.pattern.permute.xlu0 5
    %1357 = vperm.xlu0 %1356, %v678
    %v1358 = vpop.permute.xlu0 %1357
    %1360 = vset.pattern.permute.xlu0 5
    %1361 = vperm.xlu0 %1360, %v679
    %v1362 = vpop.permute.xlu0 %1361
    %v1364 = vadd.f32 %v1354, %v1358
    %v1365 = vadd.f32 %v1355, %v1362
    %v1366 = vmax.f32 %v1364, 0.0
    %v1367 = vmax.f32 %v1365, 0.0
    %s1368 = scalar_lea.vmem [#allocation2], 64
    %v1369 = vld [vmem:[%s1368] sm:$0xff]
    %1371 = vset.pattern.permute.xlu0 6
    %1372 = vperm.xlu0 %1371, %v1316
    %v1373 = vpop.permute.xlu0 %1372
    %vm1375 = vcmask 130048
    %v1377 = vsel %vm1375, %v1369, 0
    %1379 = vmatprep.subr.mxu0 0.0
    %v1380 = vand.u32 %v1366, 4294901760
    %1381 = vmatpush1.msra.mxu0 %v1380
    %1382 = vmatprep.subr.mxu0 0.0
    %v1383 = vand.u32 %v1367, 4294901760
    %1384 = vmatpush1.msra.mxu0 %v1383
    %1385 = vmatprep.subr.mxu0 0.0
    %1386 = vmatpush1.msra.mxu0 0.0
    %1387 = vmatprep.subr.mxu0 0.0
    %1388 = vmatpush1.msra.mxu0 0.0
    %1389 = vmatprep.subr.mxu0 0.0
    %1390 = vmatpush1.msra.mxu0 0.0
    %1391 = vmatprep.subr.mxu0 0.0
    %1392 = vmatpush1.msra.mxu0 0.0
    %1393 = vmatprep.subr.mxu0 0.0
    %1394 = vmatpush1.msra.mxu0 0.0
    %1395 = vmatprep.subr.mxu0 0.0
    %1396 = vmatpush1.msra.mxu0 0.0
    %1397 = vmatprep.subr.mxu0 0.0
    %1398 = vmatpush1.msra.mxu0 0.0
    %1399 = vmatprep.subr.mxu0 0.0
    %1400 = vmatpush1.msra.mxu0 0.0
    %1401 = vmatprep.subr.mxu0 0.0
    %1402 = vmatpush1.msra.mxu0 0.0
    %1403 = vmatprep.subr.mxu0 0.0
    %1404 = vmatpush1.msra.mxu0 0.0
    %1405 = vmatprep.subr.mxu0 0.0
    %1406 = vmatpush1.msra.mxu0 0.0
    %1407 = vmatprep.subr.mxu0 0.0
    %1408 = vmatpush1.msra.mxu0 0.0
    %1409 = vmatprep.subr.mxu0 0.0
    %1410 = vmatpush1.msra.mxu0 0.0
    %1411 = vmatprep.subr.mxu0 0.0
    %1412 = vmatpush1.msra.mxu0 0.0
    %1413 = vmatprep.subr.mxu0 0.0
    %1414 = vmatpush1.msra.mxu0 0.0
    %1415 = vmatprep.subr.mxu0 0.0
    %1416 = vmatpush1.msra.mxu0 0.0
    %1417 = vmatprep.subr.mxu0 0.0
    %1418 = vmatpush1.msra.mxu0 0.0
    %1419 = vmatprep.subr.mxu0 0.0
    %1420 = vmatpush1.msra.mxu0 0.0
    %1421 = vmatprep.subr.mxu0 0.0
    %1422 = vmatpush1.msra.mxu0 0.0
    %1423 = vmatprep.subr.mxu0 0.0
    %1424 = vmatpush1.msra.mxu0 0.0
    %1425 = vmatprep.subr.mxu0 0.0
    %1426 = vmatpush1.msra.mxu0 0.0
    %1427 = vmatprep.subr.mxu0 0.0
    %1428 = vmatpush1.msra.mxu0 0.0
    %1429 = vmatprep.subr.mxu0 0.0
    %1430 = vmatpush1.msra.mxu0 0.0
    %1431 = vmatprep.subr.mxu0 0.0
    %1432 = vmatpush1.msra.mxu0 0.0
    %1433 = vmatprep.subr.mxu0 0.0
    %1434 = vmatpush1.msra.mxu0 0.0
    %1435 = vmatprep.subr.mxu0 0.0
    %1436 = vmatpush1.msra.mxu0 0.0
    %1437 = vmatprep.subr.mxu0 0.0
    %1438 = vmatpush1.msra.mxu0 0.0
    %1439 = vmatprep.subr.mxu0 0.0
    %1440 = vmatpush1.msra.mxu0 0.0
    %1441 = vmatprep.subr.mxu0 0.0
    %1442 = vmatpush1.msra.mxu0 0.0
    %1443 = vmatprep.subr.mxu0 0.0
    %1444 = vmatpush1.msra.mxu0 0.0
    %1445 = vmatprep.mubr.f32.mxu0 0.0
    %v1446 = vand.u32 %v1377, 4294901760
    %v1447 = vsub.f32 %v1377, %v1446
    %v1448 = vand.u32 %v1447, 4294901760
    %v1449 = vsub.f32 %v1447, %v1448
    %v1450 = vand.u32 %v1449, 4294901760
    %1451 = vmatmul.mubr.f32.gmra.mrb[0].mxu0 %v1450
    %v1452 = vpop.f32.mrb[0].mxu0
    %v1453 = vadd.f32 %v1373, %v1452
    %v1454 = vpop.f32.mrb[0].mxu0
    %1455 = vdwg.mxu0
    %1456 = vmatprep.subr.mxu0 0.0
    %v1457 = vand.u32 %v1366, 4294901760
    %v1458 = vsub.f32 %v1366, %v1457
    %v1459 = vand.u32 %v1458, 4294901760
    %v1460 = vsub.f32 %v1458, %v1459
    %v1461 = vand.u32 %v1460, 4294901760
    %1462 = vmatpush1.msra.mxu0 %v1461
    %1463 = vmatprep.subr.mxu0 0.0
    %v1464 = vand.u32 %v1367, 4294901760
    %v1465 = vsub.f32 %v1367, %v1464
    %v1466 = vand.u32 %v1465, 4294901760
    %v1467 = vsub.f32 %v1465, %v1466
    %v1468 = vand.u32 %v1467, 4294901760
    %1469 = vmatpush1.msra.mxu0 %v1468
    %1470 = vmatprep.subr.mxu0 0.0
    %1471 = vmatpush1.msra.mxu0 0.0
    %1472 = vmatprep.subr.mxu0 0.0
    %1473 = vmatpush1.msra.mxu0 0.0
    %1474 = vmatprep.subr.mxu0 0.0
    %1475 = vmatpush1.msra.mxu0 0.0
    %1476 = vmatprep.subr.mxu0 0.0
    %1477 = vmatpush1.msra.mxu0 0.0
    %1478 = vmatprep.subr.mxu0 0.0
    %1479 = vmatpush1.msra.mxu0 0.0
    %1480 = vmatprep.subr.mxu0 0.0
    %1481 = vmatpush1.msra.mxu0 0.0
    %1482 = vmatprep.subr.mxu0 0.0
    %1483 = vmatpush1.msra.mxu0 0.0
    %1484 = vmatprep.subr.mxu0 0.0
    %1485 = vmatpush1.msra.mxu0 0.0
    %1486 = vmatprep.subr.mxu0 0.0
    %1487 = vmatpush1.msra.mxu0 0.0
    %1488 = vmatprep.subr.mxu0 0.0
    %1489 = vmatpush1.msra.mxu0 0.0
    %1490 = vmatprep.subr.mxu0 0.0
    %1491 = vmatpush1.msra.mxu0 0.0
    %1492 = vmatprep.subr.mxu0 0.0
    %1493 = vmatpush1.msra.mxu0 0.0
    %1494 = vmatprep.subr.mxu0 0.0
    %1495 = vmatpush1.msra.mxu0 0.0
    %1496 = vmatprep.subr.mxu0 0.0
    %1497 = vmatpush1.msra.mxu0 0.0
    %1498 = vmatprep.subr.mxu0 0.0
    %1499 = vmatpush1.msra.mxu0 0.0
    %1500 = vmatprep.subr.mxu0 0.0
    %1501 = vmatpush1.msra.mxu0 0.0
    %1502 = vmatprep.subr.mxu0 0.0
    %1503 = vmatpush1.msra.mxu0 0.0
    %1504 = vmatprep.subr.mxu0 0.0
    %1505 = vmatpush1.msra.mxu0 0.0
    %1506 = vmatprep.subr.mxu0 0.0
    %1507 = vmatpush1.msra.mxu0 0.0
    %1508 = vmatprep.subr.mxu0 0.0
    %1509 = vmatpush1.msra.mxu0 0.0
    %1510 = vmatprep.subr.mxu0 0.0
    %1511 = vmatpush1.msra.mxu0 0.0
    %1512 = vmatprep.subr.mxu0 0.0
    %1513 = vmatpush1.msra.mxu0 0.0
    %1514 = vmatprep.subr.mxu0 0.0
    %1515 = vmatpush1.msra.mxu0 0.0
    %1516 = vmatprep.subr.mxu0 0.0
    %1517 = vmatpush1.msra.mxu0 0.0
    %1518 = vmatprep.subr.mxu0 0.0
    %1519 = vmatpush1.msra.mxu0 0.0
    %1520 = vmatprep.subr.mxu0 0.0
    %1521 = vmatpush1.msra.mxu0 0.0
    %1522 = vmatprep.subr.mxu0 0.0
    %1523 = vmatpush1.msra.mxu0 0.0
    %1524 = vmatprep.subr.mxu0 0.0
    %1525 = vmatpush1.msra.mxu0 0.0
    %1526 = vmatprep.subr.mxu0 0.0
    %1527 = vmatpush1.msra.mxu0 0.0
    %1528 = vmatprep.subr.mxu0 0.0
    %1529 = vmatpush1.msra.mxu0 0.0
    %1530 = vmatprep.mubr.f32.mxu0 0.0
    %v1531 = vand.u32 %v1377, 4294901760
    %1532 = vmatmul.mubr.f32.gmra.mrb[0].mxu0 %v1531
    %v1533 = vpop.f32.mrb[0].mxu0
    %v1534 = vadd.f32 %v1453, %v1533
    %v1535 = vpop.f32.mrb[0].mxu0
    %1536 = vdwg.mxu0
    %1537 = vmatprep.subr.mxu0 0.0
    %v1538 = vand.u32 %v1366, 4294901760
    %v1539 = vsub.f32 %v1366, %v1538
    %1540 = vmatpush1.msra.mxu0 %v1539
    %1541 = vmatprep.subr.mxu0 0.0
    %v1542 = vand.u32 %v1367, 4294901760
    %v1543 = vsub.f32 %v1367, %v1542
    %1544 = vmatpush1.msra.mxu0 %v1543
    %1545 = vmatprep.subr.mxu0 0.0
    %1546 = vmatpush1.msra.mxu0 0.0
    %1547 = vmatprep.subr.mxu0 0.0
    %1548 = vmatpush1.msra.mxu0 0.0
    %1549 = vmatprep.subr.mxu0 0.0
    %1550 = vmatpush1.msra.mxu0 0.0
    %1551 = vmatprep.subr.mxu0 0.0
    %1552 = vmatpush1.msra.mxu0 0.0
    %1553 = vmatprep.subr.mxu0 0.0
    %1554 = vmatpush1.msra.mxu0 0.0
    %1555 = vmatprep.subr.mxu0 0.0
    %1556 = vmatpush1.msra.mxu0 0.0
    %1557 = vmatprep.subr.mxu0 0.0
    %1558 = vmatpush1.msra.mxu0 0.0
    %1559 = vmatprep.subr.mxu0 0.0
    %1560 = vmatpush1.msra.mxu0 0.0
    %1561 = vmatprep.subr.mxu0 0.0
    %1562 = vmatpush1.msra.mxu0 0.0
    %1563 = vmatprep.subr.mxu0 0.0
    %1564 = vmatpush1.msra.mxu0 0.0
    %1565 = vmatprep.subr.mxu0 0.0
    %1566 = vmatpush1.msra.mxu0 0.0
    %1567 = vmatprep.subr.mxu0 0.0
    %1568 = vmatpush1.msra.mxu0 0.0
    %1569 = vmatprep.subr.mxu0 0.0
    %1570 = vmatpush1.msra.mxu0 0.0
    %1571 = vmatprep.subr.mxu0 0.0
    %1572 = vmatpush1.msra.mxu0 0.0
    %1573 = vmatprep.subr.mxu0 0.0
    %1574 = vmatpush1.msra.mxu0 0.0
    %1575 = vmatprep.subr.mxu0 0.0
    %1576 = vmatpush1.msra.mxu0 0.0
    %1577 = vmatprep.subr.mxu0 0.0
    %1578 = vmatpush1.msra.mxu0 0.0
    %1579 = vmatprep.subr.mxu0 0.0
    %1580 = vmatpush1.msra.mxu0 0.0
    %1581 = vmatprep.subr.mxu0 0.0
    %1582 = vmatpush1.msra.mxu0 0.0
    %1583 = vmatprep.subr.mxu0 0.0
    %1584 = vmatpush1.msra.mxu0 0.0
    %1585 = vmatprep.subr.mxu0 0.0
    %1586 = vmatpush1.msra.mxu0 0.0
    %1587 = vmatprep.subr.mxu0 0.0
    %1588 = vmatpush1.msra.mxu0 0.0
    %1589 = vmatprep.subr.mxu0 0.0
    %1590 = vmatpush1.msra.mxu0 0.0
    %1591 = vmatprep.subr.mxu0 0.0
    %1592 = vmatpush1.msra.mxu0 0.0
    %1593 = vmatprep.subr.mxu0 0.0
    %1594 = vmatpush1.msra.mxu0 0.0
    %1595 = vmatprep.subr.mxu0 0.0
    %1596 = vmatpush1.msra.mxu0 0.0
    %1597 = vmatprep.subr.mxu0 0.0
    %1598 = vmatpush1.msra.mxu0 0.0
    %1599 = vmatprep.subr.mxu0 0.0
    %1600 = vmatpush1.msra.mxu0 0.0
    %1601 = vmatprep.subr.mxu0 0.0
    %1602 = vmatpush1.msra.mxu0 0.0
    %1603 = vmatprep.subr.mxu0 0.0
    %1604 = vmatpush1.msra.mxu0 0.0
    %1605 = vmatprep.mubr.f32.mxu0 0.0
    %v1606 = vand.u32 %v1377, 4294901760
    %v1607 = vsub.f32 %v1377, %v1606
    %1608 = vmatmul.mubr.f32.gmra.mrb[0].mxu0 %v1607
    %v1609 = vpop.f32.mrb[0].mxu0
    %v1610 = vadd.f32 %v1534, %v1609
    %v1611 = vpop.f32.mrb[0].mxu0
    %1612 = vdwg.mxu0
    %1613 = vmatprep.subr.mxu0 0.0
    %v1614 = vand.u32 %v1366, 4294901760
    %1615 = vmatpush1.msra.mxu0 %v1614
    %1616 = vmatprep.subr.mxu0 0.0
    %v1617 = vand.u32 %v1367, 4294901760
    %1618 = vmatpush1.msra.mxu0 %v1617
    %1619 = vmatprep.subr.mxu0 0.0
    %1620 = vmatpush1.msra.mxu0 0.0
    %1621 = vmatprep.subr.mxu0 0.0
    %1622 = vmatpush1.msra.mxu0 0.0
    %1623 = vmatprep.subr.mxu0 0.0
    %1624 = vmatpush1.msra.mxu0 0.0
    %1625 = vmatprep.subr.mxu0 0.0
    %1626 = vmatpush1.msra.mxu0 0.0
    %1627 = vmatprep.subr.mxu0 0.0
    %1628 = vmatpush1.msra.mxu0 0.0
    %1629 = vmatprep.subr.mxu0 0.0
    %1630 = vmatpush1.msra.mxu0 0.0
    %1631 = vmatprep.subr.mxu0 0.0
    %1632 = vmatpush1.msra.mxu0 0.0
    %1633 = vmatprep.subr.mxu0 0.0
    %1634 = vmatpush1.msra.mxu0 0.0
    %1635 = vmatprep.subr.mxu0 0.0
    %1636 = vmatpush1.msra.mxu0 0.0
    %1637 = vmatprep.subr.mxu0 0.0
    %1638 = vmatpush1.msra.mxu0 0.0
    %1639 = vmatprep.subr.mxu0 0.0
    %1640 = vmatpush1.msra.mxu0 0.0
    %1641 = vmatprep.subr.mxu0 0.0
    %1642 = vmatpush1.msra.mxu0 0.0
    %1643 = vmatprep.subr.mxu0 0.0
    %1644 = vmatpush1.msra.mxu0 0.0
    %1645 = vmatprep.subr.mxu0 0.0
    %1646 = vmatpush1.msra.mxu0 0.0
    %1647 = vmatprep.subr.mxu0 0.0
    %1648 = vmatpush1.msra.mxu0 0.0
    %1649 = vmatprep.subr.mxu0 0.0
    %1650 = vmatpush1.msra.mxu0 0.0
    %1651 = vmatprep.subr.mxu0 0.0
    %1652 = vmatpush1.msra.mxu0 0.0
    %1653 = vmatprep.subr.mxu0 0.0
    %1654 = vmatpush1.msra.mxu0 0.0
    %1655 = vmatprep.subr.mxu0 0.0
    %1656 = vmatpush1.msra.mxu0 0.0
    %1657 = vmatprep.subr.mxu0 0.0
    %1658 = vmatpush1.msra.mxu0 0.0
    %1659 = vmatprep.subr.mxu0 0.0
    %1660 = vmatpush1.msra.mxu0 0.0
    %1661 = vmatprep.subr.mxu0 0.0
    %1662 = vmatpush1.msra.mxu0 0.0
    %1663 = vmatprep.subr.mxu0 0.0
    %1664 = vmatpush1.msra.mxu0 0.0
    %1665 = vmatprep.subr.mxu0 0.0
    %1666 = vmatpush1.msra.mxu0 0.0
    %1667 = vmatprep.subr.mxu0 0.0
    %1668 = vmatpush1.msra.mxu0 0.0
    %1669 = vmatprep.subr.mxu0 0.0
    %1670 = vmatpush1.msra.mxu0 0.0
    %1671 = vmatprep.subr.mxu0 0.0
    %1672 = vmatpush1.msra.mxu0 0.0
    %1673 = vmatprep.subr.mxu0 0.0
    %1674 = vmatpush1.msra.mxu0 0.0
    %1675 = vmatprep.subr.mxu0 0.0
    %1676 = vmatpush1.msra.mxu0 0.0
    %1677 = vmatprep.subr.mxu0 0.0
    %1678 = vmatpush1.msra.mxu0 0.0
    %1679 = vmatprep.mubr.f32.mxu0 0.0
    %v1680 = vand.u32 %v1377, 4294901760
    %v1681 = vsub.f32 %v1377, %v1680
    %v1682 = vand.u32 %v1681, 4294901760
    %1683 = vmatmul.mubr.f32.gmra.mrb[0].mxu0 %v1682
    %v1684 = vpop.f32.mrb[0].mxu0
    %v1685 = vadd.f32 %v1610, %v1684
    %v1686 = vpop.f32.mrb[0].mxu0
    %1687 = vdwg.mxu0
    %1688 = vmatprep.subr.mxu0 0.0
    %v1689 = vand.u32 %v1366, 4294901760
    %v1690 = vsub.f32 %v1366, %v1689
    %v1691 = vand.u32 %v1690, 4294901760
    %1692 = vmatpush1.msra.mxu0 %v1691
    %1693 = vmatprep.subr.mxu0 0.0
    %v1694 = vand.u32 %v1367, 4294901760
    %v1695 = vsub.f32 %v1367, %v1694
    %v1696 = vand.u32 %v1695, 4294901760
    %1697 = vmatpush1.msra.mxu0 %v1696
    %1698 = vmatprep.subr.mxu0 0.0
    %1699 = vmatpush1.msra.mxu0 0.0
    %1700 = vmatprep.subr.mxu0 0.0
    %1701 = vmatpush1.msra.mxu0 0.0
    %1702 = vmatprep.subr.mxu0 0.0
    %1703 = vmatpush1.msra.mxu0 0.0
    %1704 = vmatprep.subr.mxu0 0.0
    %1705 = vmatpush1.msra.mxu0 0.0
    %1706 = vmatprep.subr.mxu0 0.0
    %1707 = vmatpush1.msra.mxu0 0.0
    %1708 = vmatprep.subr.mxu0 0.0
    %1709 = vmatpush1.msra.mxu0 0.0
    %1710 = vmatprep.subr.mxu0 0.0
    %1711 = vmatpush1.msra.mxu0 0.0
    %1712 = vmatprep.subr.mxu0 0.0
    %1713 = vmatpush1.msra.mxu0 0.0
    %1714 = vmatprep.subr.mxu0 0.0
    %1715 = vmatpush1.msra.mxu0 0.0
    %1716 = vmatprep.subr.mxu0 0.0
    %1717 = vmatpush1.msra.mxu0 0.0
    %1718 = vmatprep.subr.mxu0 0.0
    %1719 = vmatpush1.msra.mxu0 0.0
    %1720 = vmatprep.subr.mxu0 0.0
    %1721 = vmatpush1.msra.mxu0 0.0
    %1722 = vmatprep.subr.mxu0 0.0
    %1723 = vmatpush1.msra.mxu0 0.0
    %1724 = vmatprep.subr.mxu0 0.0
    %1725 = vmatpush1.msra.mxu0 0.0
    %1726 = vmatprep.subr.mxu0 0.0
    %1727 = vmatpush1.msra.mxu0 0.0
    %1728 = vmatprep.subr.mxu0 0.0
    %1729 = vmatpush1.msra.mxu0 0.0
    %1730 = vmatprep.subr.mxu0 0.0
    %1731 = vmatpush1.msra.mxu0 0.0
    %1732 = vmatprep.subr.mxu0 0.0
    %1733 = vmatpush1.msra.mxu0 0.0
    %1734 = vmatprep.subr.mxu0 0.0
    %1735 = vmatpush1.msra.mxu0 0.0
    %1736 = vmatprep.subr.mxu0 0.0
    %1737 = vmatpush1.msra.mxu0 0.0
    %1738 = vmatprep.subr.mxu0 0.0
    %1739 = vmatpush1.msra.mxu0 0.0
    %1740 = vmatprep.subr.mxu0 0.0
    %1741 = vmatpush1.msra.mxu0 0.0
    %1742 = vmatprep.subr.mxu0 0.0
    %1743 = vmatpush1.msra.mxu0 0.0
    %1744 = vmatprep.subr.mxu0 0.0
    %1745 = vmatpush1.msra.mxu0 0.0
    %1746 = vmatprep.subr.mxu0 0.0
    %1747 = vmatpush1.msra.mxu0 0.0
    %1748 = vmatprep.subr.mxu0 0.0
    %1749 = vmatpush1.msra.mxu0 0.0
    %1750 = vmatprep.subr.mxu0 0.0
    %1751 = vmatpush1.msra.mxu0 0.0
    %1752 = vmatprep.subr.mxu0 0.0
    %1753 = vmatpush1.msra.mxu0 0.0
    %1754 = vmatprep.subr.mxu0 0.0
    %1755 = vmatpush1.msra.mxu0 0.0
    %1756 = vmatprep.subr.mxu0 0.0
    %1757 = vmatpush1.msra.mxu0 0.0
    %1758 = vmatprep.mubr.f32.mxu0 0.0
    %v1759 = vand.u32 %v1377, 4294901760
    %1760 = vmatmul.mubr.f32.gmra.mrb[0].mxu0 %v1759
    %v1761 = vpop.f32.mrb[0].mxu0
    %v1762 = vadd.f32 %v1685, %v1761
    %v1763 = vpop.f32.mrb[0].mxu0
    %1764 = vdwg.mxu0
    %1765 = vmatprep.subr.mxu0 0.0
    %v1766 = vand.u32 %v1366, 4294901760
    %1767 = vmatpush1.msra.mxu0 %v1766
    %1768 = vmatprep.subr.mxu0 0.0
    %v1769 = vand.u32 %v1367, 4294901760
    %1770 = vmatpush1.msra.mxu0 %v1769
    %1771 = vmatprep.subr.mxu0 0.0
    %1772 = vmatpush1.msra.mxu0 0.0
    %1773 = vmatprep.subr.mxu0 0.0
    %1774 = vmatpush1.msra.mxu0 0.0
    %1775 = vmatprep.subr.mxu0 0.0
    %1776 = vmatpush1.msra.mxu0 0.0
    %1777 = vmatprep.subr.mxu0 0.0
    %1778 = vmatpush1.msra.mxu0 0.0
    %1779 = vmatprep.subr.mxu0 0.0
    %1780 = vmatpush1.msra.mxu0 0.0
    %1781 = vmatprep.subr.mxu0 0.0
    %1782 = vmatpush1.msra.mxu0 0.0
    %1783 = vmatprep.subr.mxu0 0.0
    %1784 = vmatpush1.msra.mxu0 0.0
    %1785 = vmatprep.subr.mxu0 0.0
    %1786 = vmatpush1.msra.mxu0 0.0
    %1787 = vmatprep.subr.mxu0 0.0
    %1788 = vmatpush1.msra.mxu0 0.0
    %1789 = vmatprep.subr.mxu0 0.0
    %1790 = vmatpush1.msra.mxu0 0.0
    %1791 = vmatprep.subr.mxu0 0.0
    %1792 = vmatpush1.msra.mxu0 0.0
    %1793 = vmatprep.subr.mxu0 0.0
    %1794 = vmatpush1.msra.mxu0 0.0
    %1795 = vmatprep.subr.mxu0 0.0
    %1796 = vmatpush1.msra.mxu0 0.0
    %1797 = vmatprep.subr.mxu0 0.0
    %1798 = vmatpush1.msra.mxu0 0.0
    %1799 = vmatprep.subr.mxu0 0.0
    %1800 = vmatpush1.msra.mxu0 0.0
    %1801 = vmatprep.subr.mxu0 0.0
    %1802 = vmatpush1.msra.mxu0 0.0
    %1803 = vmatprep.subr.mxu0 0.0
    %1804 = vmatpush1.msra.mxu0 0.0
    %1805 = vmatprep.subr.mxu0 0.0
    %1806 = vmatpush1.msra.mxu0 0.0
    %1807 = vmatprep.subr.mxu0 0.0
    %1808 = vmatpush1.msra.mxu0 0.0
    %1809 = vmatprep.subr.mxu0 0.0
    %1810 = vmatpush1.msra.mxu0 0.0
    %1811 = vmatprep.subr.mxu0 0.0
    %1812 = vmatpush1.msra.mxu0 0.0
    %1813 = vmatprep.subr.mxu0 0.0
    %1814 = vmatpush1.msra.mxu0 0.0
    %1815 = vmatprep.subr.mxu0 0.0
    %1816 = vmatpush1.msra.mxu0 0.0
    %1817 = vmatprep.subr.mxu0 0.0
    %1818 = vmatpush1.msra.mxu0 0.0
    %1819 = vmatprep.subr.mxu0 0.0
    %1820 = vmatpush1.msra.mxu0 0.0
    %1821 = vmatprep.subr.mxu0 0.0
    %1822 = vmatpush1.msra.mxu0 0.0
    %1823 = vmatprep.subr.mxu0 0.0
    %1824 = vmatpush1.msra.mxu0 0.0
    %1825 = vmatprep.subr.mxu0 0.0
    %1826 = vmatpush1.msra.mxu0 0.0
    %1827 = vmatprep.subr.mxu0 0.0
    %1828 = vmatpush1.msra.mxu0 0.0
    %1829 = vmatprep.subr.mxu0 0.0
    %1830 = vmatpush1.msra.mxu0 0.0
    %1831 = vmatprep.mubr.f32.mxu0 0.0
    %v1832 = vand.u32 %v1377, 4294901760
    %1833 = vmatmul.mubr.f32.gmra.mrb[0].mxu0 %v1832
    %v1834 = vpop.f32.mrb[0].mxu0
    %v1835 = vadd.f32 %v1762, %v1834
    %v1836 = vpop.f32.mrb[0].mxu0
    %1837 = vdwg.mxu0
    %v1838 = vld [vmem:[%s2] sm:$0xf]
    %v1839 = vsel %vm680, %v1835, 0.0
    %v1840 = vrot.slane %v1839, 4
    %v1841 = vadd.f32 %v1839, %v1840
    %v1842 = vrot.slane %v1841, 2
    %v1843 = vadd.f32 %v1841, %v1842
    %v1844 = vrot.slane %v1843, 1
    %v1845 = vadd.f32 %v1843, %v1844
    %v1846 = vrcp.pop 8.0
    %v1847 = vmul.f32 %v1845, %v1846
    %v1848 = vsub.f32 %v1835, %v1847
    %v1849 = vmul.f32 %v1848, %v1848
    %v1850 = vsel %vm680, %v1849, 0.0
    %v1851 = vrot.slane %v1850, 4
    %v1852 = vadd.f32 %v1850, %v1851
    %v1853 = vrot.slane %v1852, 2
    %v1854 = vadd.f32 %v1852, %v1853
    %v1855 = vrot.slane %v1854, 1
    %v1856 = vadd.f32 %v1854, %v1855
    %v1857 = vmul.f32 %v1856, %v1846
    %v1858 = vadd.f32 %v1857, 1e-05
    %v1859 = vrsqrt.pop %v1858
    %v1860 = vmul.f32 %v1848, %v1859
    %1861 = vset.pattern.permute.xlu0 7
    %1862 = vperm.xlu0 %1861, %v1316
    %v1863 = vpop.permute.xlu0 %1862
    %v1865 = vmul.f32 %v1860, %v1863
    %1866 = vset.pattern.permute.xlu0 8
    %1867 = vperm.xlu0 %1866, %v1316
    %v1868 = vpop.permute.xlu0 %1867
    %v1870 = vadd.f32 %v1865, %v1868
    %v1871 = vmax.f32 %v1870, 0.0
    %s1872 = scalar_lea.vmem [#allocation2], 96
    %v1873 = vld [vmem:[%s1872] sm:$0xf]
    %1875 = vset.pattern.permute.xlu0 9
    %1876 = vperm.xlu0 %1875, %v1838
    %v1877 = vpop.permute.xlu0 %1876
    %v1880 = vsel %vm680, %v1873, 0
    %1882 = vmatprep.subr.mxu0 0.0
    %v1883 = vand.u32 %v1871, 4294901760
    %1884 = vmatpush1.msra.mxu0 %v1883
    %1885 = vmatprep.subr.mxu0 0.0
    %1886 = vmatpush1.msra.mxu0 0.0
    %1887 = vmatprep.subr.mxu0 0.0
    %1888 = vmatpush1.msra.mxu0 0.0
    %1889 = vmatprep.subr.mxu0 0.0
    %1890 = vmatpush1.msra.mxu0 0.0
    %1891 = vmatprep.subr.mxu0 0.0
    %1892 = vmatpush1.msra.mxu0 0.0
    %1893 = vmatprep.subr.mxu0 0.0
    %1894 = vmatpush1.msra.mxu0 0.0
    %1895 = vmatprep.subr.mxu0 0.0
    %1896 = vmatpush1.msra.mxu0 0.0
    %1897 = vmatprep.subr.mxu0 0.0
    %1898 = vmatpush1.msra.mxu0 0.0
    %1899 = vmatprep.subr.mxu0 0.0
    %1900 = vmatpush1.msra.mxu0 0.0
    %1901 = vmatprep.subr.mxu0 0.0
    %1902 = vmatpush1.msra.mxu0 0.0
    %1903 = vmatprep.subr.mxu0 0.0
    %1904 = vmatpush1.msra.mxu0 0.0
    %1905 = vmatprep.subr.mxu0 0.0
    %1906 = vmatpush1.msra.mxu0 0.0
    %1907 = vmatprep.subr.mxu0 0.0
    %1908 = vmatpush1.msra.mxu0 0.0
    %1909 = vmatprep.subr.mxu0 0.0
    %1910 = vmatpush1.msra.mxu0 0.0
    %1911 = vmatprep.subr.mxu0 0.0
    %1912 = vmatpush1.msra.mxu0 0.0
    %1913 = vmatprep.subr.mxu0 0.0
    %1914 = vmatpush1.msra.mxu0 0.0
    %1915 = vmatprep.subr.mxu0 0.0
    %1916 = vmatpush1.msra.mxu0 0.0
    %1917 = vmatprep.subr.mxu0 0.0
    %1918 = vmatpush1.msra.mxu0 0.0
    %1919 = vmatprep.subr.mxu0 0.0
    %1920 = vmatpush1.msra.mxu0 0.0
    %1921 = vmatprep.subr.mxu0 0.0
    %1922 = vmatpush1.msra.mxu0 0.0
    %1923 = vmatprep.subr.mxu0 0.0
    %1924 = vmatpush1.msra.mxu0 0.0
    %1925 = vmatprep.subr.mxu0 0.0
    %1926 = vmatpush1.msra.mxu0 0.0
    %1927 = vmatprep.subr.mxu0 0.0
    %1928 = vmatpush1.msra.mxu0 0.0
    %1929 = vmatprep.subr.mxu0 0.0
    %1930 = vmatpush1.msra.mxu0 0.0
    %1931 = vmatprep.subr.mxu0 0.0
    %1932 = vmatpush1.msra.mxu0 0.0
    %1933 = vmatprep.subr.mxu0 0.0
    %1934 = vmatpush1.msra.mxu0 0.0
    %1935 = vmatprep.subr.mxu0 0.0
    %1936 = vmatpush1.msra.mxu0 0.0
    %1937 = vmatprep.subr.mxu0 0.0
    %1938 = vmatpush1.msra.mxu0 0.0
    %1939 = vmatprep.subr.mxu0 0.0
    %1940 = vmatpush1.msra.mxu0 0.0
    %1941 = vmatprep.subr.mxu0 0.0
    %1942 = vmatpush1.msra.mxu0 0.0
    %1943 = vmatprep.subr.mxu0 0.0
    %1944 = vmatpush1.msra.mxu0 0.0
    %1945 = vmatprep.subr.mxu0 0.0
    %1946 = vmatpush1.msra.mxu0 0.0
    %1947 = vmatprep.mubr.f32.mxu0 0.0
    %v1948 = vand.u32 %v1880, 4294901760
    %v1949 = vsub.f32 %v1880, %v1948
    %v1950 = vand.u32 %v1949, 4294901760
    %v1951 = vsub.f32 %v1949, %v1950
    %v1952 = vand.u32 %v1951, 4294901760
    %1953 = vmatmul.mubr.f32.gmra.mrb[0].mxu0 %v1952
    %v1954 = vpop.f32.mrb[0].mxu0
    %v1955 = vadd.f32 %v1877, %v1954
    %v1956 = vpop.f32.mrb[0].mxu0
    %1957 = vdwg.mxu0
    %1958 = vmatprep.subr.mxu0 0.0
    %v1959 = vand.u32 %v1871, 4294901760
    %v1960 = vsub.f32 %v1871, %v1959
    %v1961 = vand.u32 %v1960, 4294901760
    %v1962 = vsub.f32 %v1960, %v1961
    %v1963 = vand.u32 %v1962, 4294901760
    %1964 = vmatpush1.msra.mxu0 %v1963
    %1965 = vmatprep.subr.mxu0 0.0
    %1966 = vmatpush1.msra.mxu0 0.0
    %1967 = vmatprep.subr.mxu0 0.0
    %1968 = vmatpush1.msra.mxu0 0.0
    %1969 = vmatprep.subr.mxu0 0.0
    %1970 = vmatpush1.msra.mxu0 0.0
    %1971 = vmatprep.subr.mxu0 0.0
    %1972 = vmatpush1.msra.mxu0 0.0
    %1973 = vmatprep.subr.mxu0 0.0
    %1974 = vmatpush1.msra.mxu0 0.0
    %1975 = vmatprep.subr.mxu0 0.0
    %1976 = vmatpush1.msra.mxu0 0.0
    %1977 = vmatprep.subr.mxu0 0.0
    %1978 = vmatpush1.msra.mxu0 0.0
    %1979 = vmatprep.subr.mxu0 0.0
    %1980 = vmatpush1.msra.mxu0 0.0
    %1981 = vmatprep.subr.mxu0 0.0
    %1982 = vmatpush1.msra.mxu0 0.0
    %1983 = vmatprep.subr.mxu0 0.0
    %1984 = vmatpush1.msra.mxu0 0.0
    %1985 = vmatprep.subr.mxu0 0.0
    %1986 = vmatpush1.msra.mxu0 0.0
    %1987 = vmatprep.subr.mxu0 0.0
    %1988 = vmatpush1.msra.mxu0 0.0
    %1989 = vmatprep.subr.mxu0 0.0
    %1990 = vmatpush1.msra.mxu0 0.0
    %1991 = vmatprep.subr.mxu0 0.0
    %1992 = vmatpush1.msra.mxu0 0.0
    %1993 = vmatprep.subr.mxu0 0.0
    %1994 = vmatpush1.msra.mxu0 0.0
    %1995 = vmatprep.subr.mxu0 0.0
    %1996 = vmatpush1.msra.mxu0 0.0
    %1997 = vmatprep.subr.mxu0 0.0
    %1998 = vmatpush1.msra.mxu0 0.0
    %1999 = vmatprep.subr.mxu0 0.0
    %2000 = vmatpush1.msra.mxu0 0.0
    %2001 = vmatprep.subr.mxu0 0.0
    %2002 = vmatpush1.msra.mxu0 0.0
    %2003 = vmatprep.subr.mxu0 0.0
    %2004 = vmatpush1.msra.mxu0 0.0
    %2005 = vmatprep.subr.mxu0 0.0
    %2006 = vmatpush1.msra.mxu0 0.0
    %2007 = vmatprep.subr.mxu0 0.0
    %2008 = vmatpush1.msra.mxu0 0.0
    %2009 = vmatprep.subr.mxu0 0.0
    %2010 = vmatpush1.msra.mxu0 0.0
    %2011 = vmatprep.subr.mxu0 0.0
    %2012 = vmatpush1.msra.mxu0 0.0
    %2013 = vmatprep.subr.mxu0 0.0
    %2014 = vmatpush1.msra.mxu0 0.0
    %2015 = vmatprep.subr.mxu0 0.0
    %2016 = vmatpush1.msra.mxu0 0.0
    %2017 = vmatprep.subr.mxu0 0.0
    %2018 = vmatpush1.msra.mxu0 0.0
    %2019 = vmatprep.subr.mxu0 0.0
    %2020 = vmatpush1.msra.mxu0 0.0
    %2021 = vmatprep.subr.mxu0 0.0
    %2022 = vmatpush1.msra.mxu0 0.0
    %2023 = vmatprep.subr.mxu0 0.0
    %2024 = vmatpush1.msra.mxu0 0.0
    %2025 = vmatprep.subr.mxu0 0.0
    %2026 = vmatpush1.msra.mxu0 0.0
    %2027 = vmatprep.mubr.f32.mxu0 0.0
    %v2028 = vand.u32 %v1880, 4294901760
    %2029 = vmatmul.mubr.f32.gmra.mrb[0].mxu0 %v2028
    %v2030 = vpop.f32.mrb[0].mxu0
    %v2031 = vadd.f32 %v1955, %v2030
    %v2032 = vpop.f32.mrb[0].mxu0
    %2033 = vdwg.mxu0
    %2034 = vmatprep.subr.mxu0 0.0
    %v2035 = vand.u32 %v1871, 4294901760
    %v2036 = vsub.f32 %v1871, %v2035
    %2037 = vmatpush1.msra.mxu0 %v2036
    %2038 = vmatprep.subr.mxu0 0.0
    %2039 = vmatpush1.msra.mxu0 0.0
    %2040 = vmatprep.subr.mxu0 0.0
    %2041 = vmatpush1.msra.mxu0 0.0
    %2042 = vmatprep.subr.mxu0 0.0
    %2043 = vmatpush1.msra.mxu0 0.0
    %2044 = vmatprep.subr.mxu0 0.0
    %2045 = vmatpush1.msra.mxu0 0.0
    %2046 = vmatprep.subr.mxu0 0.0
    %2047 = vmatpush1.msra.mxu0 0.0
    %2048 = vmatprep.subr.mxu0 0.0
    %2049 = vmatpush1.msra.mxu0 0.0
    %2050 = vmatprep.subr.mxu0 0.0
    %2051 = vmatpush1.msra.mxu0 0.0
    %2052 = vmatprep.subr.mxu0 0.0
    %2053 = vmatpush1.msra.mxu0 0.0
    %2054 = vmatprep.subr.mxu0 0.0
    %2055 = vmatpush1.msra.mxu0 0.0
    %2056 = vmatprep.subr.mxu0 0.0
    %2057 = vmatpush1.msra.mxu0 0.0
    %2058 = vmatprep.subr.mxu0 0.0
    %2059 = vmatpush1.msra.mxu0 0.0
    %2060 = vmatprep.subr.mxu0 0.0
    %2061 = vmatpush1.msra.mxu0 0.0
    %2062 = vmatprep.subr.mxu0 0.0
    %2063 = vmatpush1.msra.mxu0 0.0
    %2064 = vmatprep.subr.mxu0 0.0
    %2065 = vmatpush1.msra.mxu0 0.0
    %2066 = vmatprep.subr.mxu0 0.0
    %2067 = vmatpush1.msra.mxu0 0.0
    %2068 = vmatprep.subr.mxu0 0.0
    %2069 = vmatpush1.msra.mxu0 0.0
    %2070 = vmatprep.subr.mxu0 0.0
    %2071 = vmatpush1.msra.mxu0 0.0
    %2072 = vmatprep.subr.mxu0 0.0
    %2073 = vmatpush1.msra.mxu0 0.0
    %2074 = vmatprep.subr.mxu0 0.0
    %2075 = vmatpush1.msra.mxu0 0.0
    %2076 = vmatprep.subr.mxu0 0.0
    %2077 = vmatpush1.msra.mxu0 0.0
    %2078 = vmatprep.subr.mxu0 0.0
    %2079 = vmatpush1.msra.mxu0 0.0
    %2080 = vmatprep.subr.mxu0 0.0
    %2081 = vmatpush1.msra.mxu0 0.0
    %2082 = vmatprep.subr.mxu0 0.0
    %2083 = vmatpush1.msra.mxu0 0.0
    %2084 = vmatprep.subr.mxu0 0.0
    %2085 = vmatpush1.msra.mxu0 0.0
    %2086 = vmatprep.subr.mxu0 0.0
    %2087 = vmatpush1.msra.mxu0 0.0
    %2088 = vmatprep.subr.mxu0 0.0
    %2089 = vmatpush1.msra.mxu0 0.0
    %2090 = vmatprep.subr.mxu0 0.0
    %2091 = vmatpush1.msra.mxu0 0.0
    %2092 = vmatprep.subr.mxu0 0.0
    %2093 = vmatpush1.msra.mxu0 0.0
    %2094 = vmatprep.subr.mxu0 0.0
    %2095 = vmatpush1.msra.mxu0 0.0
    %2096 = vmatprep.subr.mxu0 0.0
    %2097 = vmatpush1.msra.mxu0 0.0
    %2098 = vmatprep.subr.mxu0 0.0
    %2099 = vmatpush1.msra.mxu0 0.0
    %2100 = vmatprep.mubr.f32.mxu0 0.0
    %v2101 = vand.u32 %v1880, 4294901760
    %v2102 = vsub.f32 %v1880, %v2101
    %2103 = vmatmul.mubr.f32.gmra.mrb[0].mxu0 %v2102
    %v2104 = vpop.f32.mrb[0].mxu0
    %v2105 = vadd.f32 %v2031, %v2104
    %v2106 = vpop.f32.mrb[0].mxu0
    %2107 = vdwg.mxu0
    %2108 = vmatprep.subr.mxu0 0.0
    %v2109 = vand.u32 %v1871, 4294901760
    %2110 = vmatpush1.msra.mxu0 %v2109
    %2111 = vmatprep.subr.mxu0 0.0
    %2112 = vmatpush1.msra.mxu0 0.0
    %2113 = vmatprep.subr.mxu0 0.0
    %2114 = vmatpush1.msra.mxu0 0.0
    %2115 = vmatprep.subr.mxu0 0.0
    %2116 = vmatpush1.msra.mxu0 0.0
    %2117 = vmatprep.subr.mxu0 0.0
    %2118 = vmatpush1.msra.mxu0 0.0
    %2119 = vmatprep.subr.mxu0 0.0
    %2120 = vmatpush1.msra.mxu0 0.0
    %2121 = vmatprep.subr.mxu0 0.0
    %2122 = vmatpush1.msra.mxu0 0.0
    %2123 = vmatprep.subr.mxu0 0.0
    %2124 = vmatpush1.msra.mxu0 0.0
    %2125 = vmatprep.subr.mxu0 0.0
    %2126 = vmatpush1.msra.mxu0 0.0
    %2127 = vmatprep.subr.mxu0 0.0
    %2128 = vmatpush1.msra.mxu0 0.0
    %2129 = vmatprep.subr.mxu0 0.0
    %2130 = vmatpush1.msra.mxu0 0.0
    %2131 = vmatprep.subr.mxu0 0.0
    %2132 = vmatpush1.msra.mxu0 0.0
    %2133 = vmatprep.subr.mxu0 0.0
    %2134 = vmatpush1.msra.mxu0 0.0
    %2135 = vmatprep.subr.mxu0 0.0
    %2136 = vmatpush1.msra.mxu0 0.0
    %2137 = vmatprep.subr.mxu0 0.0
    %2138 = vmatpush1.msra.mxu0 0.0
    %2139 = vmatprep.subr.mxu0 0.0
    %2140 = vmatpush1.msra.mxu0 0.0
    %2141 = vmatprep.subr.mxu0 0.0
    %2142 = vmatpush1.msra.mxu0 0.0
    %2143 = vmatprep.subr.mxu0 0.0
    %2144 = vmatpush1.msra.mxu0 0.0
    %2145 = vmatprep.subr.mxu0 0.0
    %2146 = vmatpush1.msra.mxu0 0.0
    %2147 = vmatprep.subr.mxu0 0.0
    %2148 = vmatpush1.msra.mxu0 0.0
    %2149 = vmatprep.subr.mxu0 0.0
    %2150 = vmatpush1.msra.mxu0 0.0
    %2151 = vmatprep.subr.mxu0 0.0
    %2152 = vmatpush1.msra.mxu0 0.0
    %2153 = vmatprep.subr.mxu0 0.0
    %2154 = vmatpush1.msra.mxu0 0.0
    %2155 = vmatprep.subr.mxu0 0.0
    %2156 = vmatpush1.msra.mxu0 0.0
    %2157 = vmatprep.subr.mxu0 0.0
    %2158 = vmatpush1.msra.mxu0 0.0
    %2159 = vmatprep.subr.mxu0 0.0
    %2160 = vmatpush1.msra.mxu0 0.0
    %2161 = vmatprep.subr.mxu0 0.0
    %2162 = vmatpush1.msra.mxu0 0.0
    %2163 = vmatprep.subr.mxu0 0.0
    %2164 = vmatpush1.msra.mxu0 0.0
    %2165 = vmatprep.subr.mxu0 0.0
    %2166 = vmatpush1.msra.mxu0 0.0
    %2167 = vmatprep.subr.mxu0 0.0
    %2168 = vmatpush1.msra.mxu0 0.0
    %2169 = vmatprep.subr.mxu0 0.0
    %2170 = vmatpush1.msra.mxu0 0.0
    %2171 = vmatprep.subr.mxu0 0.0
    %2172 = vmatpush1.msra.mxu0 0.0
    %2173 = vmatprep.mubr.f32.mxu0 0.0
    %v2174 = vand.u32 %v1880, 4294901760
    %v2175 = vsub.f32 %v1880, %v2174
    %v2176 = vand.u32 %v2175, 4294901760
    %2177 = vmatmul.mubr.f32.gmra.mrb[0].mxu0 %v2176
    %v2178 = vpop.f32.mrb[0].mxu0
    %v2179 = vadd.f32 %v2105, %v2178
    %v2180 = vpop.f32.mrb[0].mxu0
    %2181 = vdwg.mxu0
    %2182 = vmatprep.subr.mxu0 0.0
    %v2183 = vand.u32 %v1871, 4294901760
    %v2184 = vsub.f32 %v1871, %v2183
    %v2185 = vand.u32 %v2184, 4294901760
    %2186 = vmatpush1.msra.mxu0 %v2185
    %2187 = vmatprep.subr.mxu0 0.0
    %2188 = vmatpush1.msra.mxu0 0.0
    %2189 = vmatprep.subr.mxu0 0.0
    %2190 = vmatpush1.msra.mxu0 0.0
    %2191 = vmatprep.subr.mxu0 0.0
    %2192 = vmatpush1.msra.mxu0 0.0
    %2193 = vmatprep.subr.mxu0 0.0
    %2194 = vmatpush1.msra.mxu0 0.0
    %2195 = vmatprep.subr.mxu0 0.0
    %2196 = vmatpush1.msra.mxu0 0.0
    %2197 = vmatprep.subr.mxu0 0.0
    %2198 = vmatpush1.msra.mxu0 0.0
    %2199 = vmatprep.subr.mxu0 0.0
    %2200 = vmatpush1.msra.mxu0 0.0
    %2201 = vmatprep.subr.mxu0 0.0
    %2202 = vmatpush1.msra.mxu0 0.0
    %2203 = vmatprep.subr.mxu0 0.0
    %2204 = vmatpush1.msra.mxu0 0.0
    %2205 = vmatprep.subr.mxu0 0.0
    %2206 = vmatpush1.msra.mxu0 0.0
    %2207 = vmatprep.subr.mxu0 0.0
    %2208 = vmatpush1.msra.mxu0 0.0
    %2209 = vmatprep.subr.mxu0 0.0
    %2210 = vmatpush1.msra.mxu0 0.0
    %2211 = vmatprep.subr.mxu0 0.0
    %2212 = vmatpush1.msra.mxu0 0.0
    %2213 = vmatprep.subr.mxu0 0.0
    %2214 = vmatpush1.msra.mxu0 0.0
    %2215 = vmatprep.subr.mxu0 0.0
    %2216 = vmatpush1.msra.mxu0 0.0
    %2217 = vmatprep.subr.mxu0 0.0
    %2218 = vmatpush1.msra.mxu0 0.0
    %2219 = vmatprep.subr.mxu0 0.0
    %2220 = vmatpush1.msra.mxu0 0.0
    %2221 = vmatprep.subr.mxu0 0.0
    %2222 = vmatpush1.msra.mxu0 0.0
    %2223 = vmatprep.subr.mxu0 0.0
    %2224 = vmatpush1.msra.mxu0 0.0
    %2225 = vmatprep.subr.mxu0 0.0
    %2226 = vmatpush1.msra.mxu0 0.0
    %2227 = vmatprep.subr.mxu0 0.0
    %2228 = vmatpush1.msra.mxu0 0.0
    %2229 = vmatprep.subr.mxu0 0.0
    %2230 = vmatpush1.msra.mxu0 0.0
    %2231 = vmatprep.subr.mxu0 0.0
    %2232 = vmatpush1.msra.mxu0 0.0
    %2233 = vmatprep.subr.mxu0 0.0
    %2234 = vmatpush1.msra.mxu0 0.0
    %2235 = vmatprep.subr.mxu0 0.0
    %2236 = vmatpush1.msra.mxu0 0.0
    %2237 = vmatprep.subr.mxu0 0.0
    %2238 = vmatpush1.msra.mxu0 0.0
    %2239 = vmatprep.subr.mxu0 0.0
    %2240 = vmatpush1.msra.mxu0 0.0
    %2241 = vmatprep.subr.mxu0 0.0
    %2242 = vmatpush1.msra.mxu0 0.0
    %2243 = vmatprep.subr.mxu0 0.0
    %2244 = vmatpush1.msra.mxu0 0.0
    %2245 = vmatprep.subr.mxu0 0.0
    %2246 = vmatpush1.msra.mxu0 0.0
    %2247 = vmatprep.subr.mxu0 0.0
    %2248 = vmatpush1.msra.mxu0 0.0
    %2249 = vmatprep.mubr.f32.mxu0 0.0
    %v2250 = vand.u32 %v1880, 4294901760
    %2251 = vmatmul.mubr.f32.gmra.mrb[0].mxu0 %v2250
    %v2252 = vpop.f32.mrb[0].mxu0
    %v2253 = vadd.f32 %v2179, %v2252
    %v2254 = vpop.f32.mrb[0].mxu0
    %2255 = vdwg.mxu0
    %2256 = vmatprep.subr.mxu0 0.0
    %v2257 = vand.u32 %v1871, 4294901760
    %2258 = vmatpush1.msra.mxu0 %v2257
    %2259 = vmatprep.subr.mxu0 0.0
    %2260 = vmatpush1.msra.mxu0 0.0
    %2261 = vmatprep.subr.mxu0 0.0
    %2262 = vmatpush1.msra.mxu0 0.0
    %2263 = vmatprep.subr.mxu0 0.0
    %2264 = vmatpush1.msra.mxu0 0.0
    %2265 = vmatprep.subr.mxu0 0.0
    %2266 = vmatpush1.msra.mxu0 0.0
    %2267 = vmatprep.subr.mxu0 0.0
    %2268 = vmatpush1.msra.mxu0 0.0
    %2269 = vmatprep.subr.mxu0 0.0
    %2270 = vmatpush1.msra.mxu0 0.0
    %2271 = vmatprep.subr.mxu0 0.0
    %2272 = vmatpush1.msra.mxu0 0.0
    %2273 = vmatprep.subr.mxu0 0.0
    %2274 = vmatpush1.msra.mxu0 0.0
    %2275 = vmatprep.subr.mxu0 0.0
    %2276 = vmatpush1.msra.mxu0 0.0
    %2277 = vmatprep.subr.mxu0 0.0
    %2278 = vmatpush1.msra.mxu0 0.0
    %2279 = vmatprep.subr.mxu0 0.0
    %2280 = vmatpush1.msra.mxu0 0.0
    %2281 = vmatprep.subr.mxu0 0.0
    %2282 = vmatpush1.msra.mxu0 0.0
    %2283 = vmatprep.subr.mxu0 0.0
    %2284 = vmatpush1.msra.mxu0 0.0
    %2285 = vmatprep.subr.mxu0 0.0
    %2286 = vmatpush1.msra.mxu0 0.0
    %2287 = vmatprep.subr.mxu0 0.0
    %2288 = vmatpush1.msra.mxu0 0.0
    %2289 = vmatprep.subr.mxu0 0.0
    %2290 = vmatpush1.msra.mxu0 0.0
    %2291 = vmatprep.subr.mxu0 0.0
    %2292 = vmatpush1.msra.mxu0 0.0
    %2293 = vmatprep.subr.mxu0 0.0
    %2294 = vmatpush1.msra.mxu0 0.0
    %2295 = vmatprep.subr.mxu0 0.0
    %2296 = vmatpush1.msra.mxu0 0.0
    %2297 = vmatprep.subr.mxu0 0.0
    %2298 = vmatpush1.msra.mxu0 0.0
    %2299 = vmatprep.subr.mxu0 0.0
    %2300 = vmatpush1.msra.mxu0 0.0
    %2301 = vmatprep.subr.mxu0 0.0
    %2302 = vmatpush1.msra.mxu0 0.0
    %2303 = vmatprep.subr.mxu0 0.0
    %2304 = vmatpush1.msra.mxu0 0.0
    %2305 = vmatprep.subr.mxu0 0.0
    %2306 = vmatpush1.msra.mxu0 0.0
    %2307 = vmatprep.subr.mxu0 0.0
    %2308 = vmatpush1.msra.mxu0 0.0
    %2309 = vmatprep.subr.mxu0 0.0
    %2310 = vmatpush1.msra.mxu0 0.0
    %2311 = vmatprep.subr.mxu0 0.0
    %2312 = vmatpush1.msra.mxu0 0.0
    %2313 = vmatprep.subr.mxu0 0.0
    %2314 = vmatpush1.msra.mxu0 0.0
    %2315 = vmatprep.subr.mxu0 0.0
    %2316 = vmatpush1.msra.mxu0 0.0
    %2317 = vmatprep.subr.mxu0 0.0
    %2318 = vmatpush1.msra.mxu0 0.0
    %2319 = vmatprep.subr.mxu0 0.0
    %2320 = vmatpush1.msra.mxu0 0.0
    %2321 = vmatprep.mubr.f32.mxu0 0.0
    %v2322 = vand.u32 %v1880, 4294901760
    %2323 = vmatmul.mubr.f32.gmra.mrb[0].mxu0 %v2322
    %v2324 = vpop.f32.mrb[0].mxu0
    %v2325 = vadd.f32 %v2253, %v2324
    %v2326 = vpop.f32.mrb[0].mxu0
    %2327 = vdwg.mxu0
    %v2328 = vld [vmem:[%s2] sm:$0x1]
    %2329 = vset.pattern.permute.xlu0 10
    %2330 = vperm.xlu0 %2329, %v1838
    %v2331 = vpop.permute.xlu0 %2330
    %v2333 = vmul.f32 %v2325, %v2331
    %vm2334 = vcmask 60416
    %v2335 = vsel %vm2334, %v2333, 0.0
    %v2336 = vrot.slane %v2335, 4
    %v2337 = vadd.f32 %v2335, %v2336
    %v2338 = vrot.slane %v2337, 2
    %v2339 = vadd.f32 %v2337, %v2338
    %v2340 = vrot.slane %v2339, 1
    %v2341 = vadd.f32 %v2339, %v2340
    %2343 = vset.pattern.permute.xlu0 11
    %2344 = vperm.xlu0 %2343, %v2328
    %v2345 = vpop.permute.xlu0 %2344
    %v2347 = vadd.f32 %v2341, %v2345
    %vm2348 = vcmask 57344
    %2349 = vst.msk [vmem:[#allocation5] sm:$0x1] %vm2348, %v2347
    // Predicated region
    $region22: #{tpu_custom_call.1} parent=1 // pred_check
      _
    $region23: #{tpu_custom_call.1} parent=1 // pred_check_branch
      %2351 = sbr.rel (0) target = $region25
    $region24: #{tpu_custom_call.1} parent=1 // pred_region
      %s2353 = ssub.s32 16, 16
      %2354 = vsyncadd [#allocation4], %s2353
      %s2356 = sshll.u32 [#allocation5], 4
      %s2357 = int_to_ptr.vmem [resolvable:$true] %s2356
      %2359 = dma.vmem_to_hbm [thread:$0]  %s2357, 16, %s4, [#allocation4]
    $region25: #{tpu_custom_call.1} parent=1 // pred_fallthru
      _
    // Predicated region
    $region26: #{tpu_custom_call.1} parent=1 // pred_check
      _
    $region27: #{tpu_custom_call.1} parent=1 // pred_check_branch
      %2361 = sbr.rel (0) target = $region29
    $region28: #{tpu_custom_call.1} parent=1 // pred_region
      %2362 = dma.done [#allocation4], 16
    $region29: #{tpu_custom_call.1} parent=1 // pred_fallthru
      _
    %2363 = vsyncpa [#allocation3], 1
    %2364 = vsyncpa [#allocation4], 1

</llo_original>
